<compile_context>
chip_gen: v6e
topology: v6e:2x2x1
jax: 0.10.0
libtpu: 0.0.40
codegen_flags: <defaults>
</compile_context>

<pallas_src>
import functools

import jax
import jax.numpy as jnp
from jax import lax
from jax.experimental import pallas as pl
from jax.experimental.pallas import tpu as pltpu

EPS = 1e-12
_LANE = 128
_SUBLANE = 8


def _round_up(n, m):
    return ((n + m - 1) // m) * m


def _vmem_capacity_bytes():
    try:
        info = pltpu.get_tpu_info()
        cap = getattr(info, "vmem_capacity_bytes", None)
        if cap:
            return int(cap)
    except Exception:
        pass
    return 64 * 1024 * 1024  # conservative (v7x per-TensorCore)


def _estimate_vmem_bytes(T, bt, Fp, hs, x_bytes):
    """Single-counting estimate: io blocks are double-buffered, weights are
    (conservatively) double-buffered, scratch is single-buffered, plus in-kernel
    f32 temporaries (projection result, y/diff/normalized output)."""
    f32 = 4
    io = 2 * T * bt * Fp * (x_bytes + f32)                                  # x + out blocks
    w = 2 * x_bytes * (Fp * 8 * hs + 2 * hs * 8 * hs + 2 * hs * Fp)         # wih2/whh2/wfc2
    w += 2 * f32 * (8 * hs + 3 * Fp)                                        # biases, gamma, beta
    scr = T * bt * 8 * hs * x_bytes + 2 * T * bt * hs * f32                 # xp + hf + hb
    tmp = T * bt * (8 * hs + 3 * Fp) * f32                                  # transients
    return io + w + scr + tmp


def _pick_b_tile(T, Fp, hs, B, x_bytes, budget):
    """Largest batch tile (multiple of the sublane granularity) that fits the
    VMEM budget; prefer >=2 grid steps so v7x's two TensorCores both get work."""
    sub = _SUBLANE if x_bytes >= 4 else 2 * _SUBLANE
    b_cap = _round_up(B, sub)
    pick = sub
    for bt in (256, 128, 64, 32, 16, 8):
        if bt < sub or bt > b_cap:
            continue
        if _estimate_vmem_bytes(T, bt, Fp, hs, x_bytes) <= budget:
            pick = bt
            break
    if b_cap >= 2 * sub and _round_up(b_cap, pick) // pick < 2:
        pick = max(sub, pick // 2)
    return pick


def _ffb_kernel(x_ref,
                wih2_ref, whh2_ref, b2_ref,     # fused input-proj / recurrence weights
                wfc2_ref, bfc_ref,              # fused output projection
                gamma_ref, beta_ref,            # gLN affine
                out_ref,
                xp_ref, hf_ref, hb_ref,
                *, hs, f_actual):
    T, Bt, Fp = x_ref.shape
    G4 = 4 * hs  # per-direction gate width, column order [i | f | o | g]

    # ---- fused fwd+bwd input projection over all timesteps: one MXU call ----
    x2 = x_ref[...].reshape(T * Bt, Fp)
    xp = jnp.dot(x2, wih2_ref[...], preferred_element_type=jnp.float32) + b2_ref[...]
    xp_ref[...] = xp.reshape(T, Bt, 8 * hs).astype(xp_ref.dtype)

    whh2 = whh2_ref[...]  # (2*hs, 8*hs), block-diagonal [fwd | bwd]

    def lstm_dir(gates, c):
        # gates: (Bt, 4*hs) pre-activations ordered [i | f | o | g]; c: (Bt, hs)
        sg = jax.nn.sigmoid(gates[:, :3 * hs])          # no wasted sigmoid on g lanes
        i = sg[:, :hs]
        f = sg[:, hs:2 * hs]
        o = sg[:, 2 * hs:]
        g = jnp.tanh(gates[:, 3 * hs:])
        c = f * c + i * g
        return o * jnp.tanh(c), c

    zeros = jnp.zeros((Bt, hs), jnp.float32)

    # Fused fwd/bwd recurrences: two independent chains per iteration, a single
    # (Bt, 2*hs) @ (2*hs, 8*hs) recurrence matmul per step.
    def body(t, carry):
        hf, cf, hb, cb = carry
        tb = T - 1 - t
        h2 = jnp.concatenate([hf, hb], axis=-1).astype(whh2.dtype)
        r = jnp.dot(h2, whh2, preferred_element_type=jnp.float32)       # (Bt, 8*hs)
        pf = xp_ref[t].astype(jnp.float32)
        pb = xp_ref[tb].astype(jnp.float32)
        hf, cf = lstm_dir(pf[:, :G4] + r[:, :G4], cf)
        hb, cb = lstm_dir(pb[:, G4:] + r[:, G4:], cb)
        hf_ref[t] = hf
        hb_ref[tb] = hb
        return hf, cf, hb, cb

    lax.fori_loop(0, T, body, (zeros, zeros, zeros, zeros),
                  unroll=True if T <= 32 else 8)

    # ReLU -> single fc matmul (K = 2*hs, fc weight pre-stacked) -> residual.
    h_all = jnp.maximum(
        jnp.concatenate([hf_ref[...], hb_ref[...]], axis=-1), 0.0
    ).reshape(T * Bt, 2 * hs)
    y = (jnp.dot(h_all.astype(wfc2_ref.dtype), wfc2_ref[...],
                 preferred_element_type=jnp.float32) + bfc_ref[...])
    # Re-load x here instead of keeping it live across the serial loop.
    y = y.reshape(T, Bt, Fp) + x_ref[...].astype(jnp.float32)

    # gLN (== GroupNorm(1, F), biased variance): per-batch stats over (T, F).
    # Both mean and variance use an explicit lane mask so padded feature lanes
    # can never pollute the statistics.
    lane = lax.broadcasted_iota(jnp.int32, (1, 1, Fp), 2)
    fmask = (lane < f_actual).astype(jnp.float32)
    cnt = float(T * f_actual)
    ym = y * fmask
    mean = jnp.sum(ym, axis=(0, 2), keepdims=True) / cnt                # (1, Bt, 1)
    diff = (y - mean) * fmask
    var = jnp.sum(diff * diff, axis=(0, 2), keepdims=True) / cnt        # (1, Bt, 1)
    yn = (y - mean) * lax.rsqrt(var + EPS)
    out_ref[...] = (yn * gamma_ref[...].reshape(1, 1, Fp)
                    + beta_ref[...].reshape(1, 1, Fp)).astype(out_ref.dtype)


def _dir_gate_cols(w, H, hs, rows_pad):
    """w: (4H, in) torch layout with gate rows [i; f; g; o] -> (rows_pad, 4*hs)
    with column order [i | f | o | g] (sigmoid gates first), each gate padded
    to hs columns and the input rows padded to rows_pad."""
    w = w.astype(jnp.float32)
    in_dim = w.shape[1]
    gates = (w[:H], w[H:2 * H], w[3 * H:4 * H], w[2 * H:3 * H])   # i, f, o, g
    cols = [jnp.pad(g.T, ((0, rows_pad - in_dim), (0, hs - H))) for g in gates]
    return jnp.concatenate(cols, axis=1)


def _dir_gate_bias(b_ih, b_hh, H, hs):
    b = (b_ih + b_hh).astype(jnp.float32)
    gates = (b[:H], b[H:2 * H], b[3 * H:4 * H], b[2 * H:3 * H])   # i, f, o, g
    return jnp.concatenate([jnp.pad(g, (0, hs - H)) for g in gates], axis=0)


def feed_forward_block(x, params, *, storage_dtype=jnp.float32, b_tile=None):
    """x: (T, B, F). params in PyTorch shape convention. storage_dtype controls
    the dtype of x / matmul weights / xp scratch (use bf16 on v6e/v7x); hidden
    state, matmul accumulation and gLN statistics stay float32."""
    T, B, F = x.shape
    H = params["w_hh_f"].shape[1]
    Fp = _round_up(F, _LANE)
    # Small H keeps its true (sublane-rounded) width instead of blowing every
    # gate up to 128 lanes; large H pads each gate to a lane multiple.
    hs = _round_up(H, _LANE) if H >= _LANE else _round_up(H, _SUBLANE)

    x_bytes = jnp.dtype(storage_dtype).itemsize
    cap = _vmem_capacity_bytes()
    if b_tile is None:
        b_tile = _pick_b_tile(T, Fp, hs, B, x_bytes, int(0.55 * cap))
    Bp = _round_up(B, b_tile)

    # ---- glue: pad / reorder / pre-transpose weights (plain XLA, runs once) ----
    wih_f = _dir_gate_cols(params["w_ih_f"], H, hs, Fp)               # (Fp, 4hs)
    wih_b = _dir_gate_cols(params["w_ih_b"], H, hs, Fp)
    wih2 = jnp.concatenate([wih_f, wih_b], axis=1)                    # (Fp, 8hs)

    whh_f = _dir_gate_cols(params["w_hh_f"], H, hs, hs)               # (hs, 4hs)
    whh_b = _dir_gate_cols(params["w_hh_b"], H, hs, hs)
    z = jnp.zeros((hs, 4 * hs), jnp.float32)
    whh2 = jnp.concatenate([jnp.concatenate([whh_f, z], axis=1),
                            jnp.concatenate([z, whh_b], axis=1)], axis=0)  # (2hs, 8hs)

    b2 = jnp.concatenate(
        [_dir_gate_bias(params["b_ih_f"], params["b_hh_f"], H, hs),
         _dir_gate_bias(params["b_ih_b"], params["b_hh_b"], H, hs)])[None]  # (1, 8hs)

    wfc_t = params["w_fc"].astype(jnp.float32).T                      # (2H, F)
    wfc2 = jnp.concatenate(
        [jnp.pad(wfc_t[:H], ((0, hs - H), (0, Fp - F))),
         jnp.pad(wfc_t[H:], ((0, hs - H), (0, Fp - F)))], axis=0)     # (2hs, Fp)
    bfc = jnp.pad(params["b_fc"].astype(jnp.float32), (0, Fp - F))[None]
    gamma = jnp.pad(params["gamma"].astype(jnp.float32), (0, Fp - F))[None]
    beta = jnp.pad(params["beta"].astype(jnp.float32), (0, Fp - F))[None]

    x_in = jnp.pad(x.astype(jnp.float32),
                   ((0, 0), (0, Bp - B), (0, Fp - F))).astype(storage_dtype)
    wih2 = wih2.astype(storage_dtype)
    whh2 = whh2.astype(storage_dtype)
    wfc2 = wfc2.astype(storage_dtype)

    grid = (Bp // b_tile,)

    def _whole(a):
        n = a.ndim
        return pl.BlockSpec(a.shape, lambda b, n=n: (0,) * n)

    x_spec = pl.BlockSpec((T, b_tile, Fp), lambda b: (0, b, 0))
    out_spec = pl.BlockSpec((T, b_tile, Fp), lambda b: (0, b, 0))
    # NOTE: the constant-index weight specs could be single-buffered via
    # pipeline_mode=pl.Buffered(1); left at default since weights are small
    # relative to the per-tile scratch here.
    in_specs = [x_spec, _whole(wih2), _whole(whh2), _whole(b2),
                _whole(wfc2), _whole(bfc), _whole(gamma), _whole(beta)]

    est = _estimate_vmem_bytes(T, b_tile, Fp, hs, x_bytes)
    vmem_limit = int(min(0.9 * cap, max(32 * 1024 * 1024, 1.3 * est)))

    out = pl.pallas_call(
        functools.partial(_ffb_kernel, hs=hs, f_actual=F),
        out_shape=jax.ShapeDtypeStruct((T, Bp, Fp), jnp.float32),
        grid=grid,
        in_specs=in_specs,
        out_specs=out_spec,
        scratch_shapes=[
            pltpu.VMEM((T, b_tile, 8 * hs), storage_dtype),   # fused input projections
            pltpu.VMEM((T, b_tile, hs), jnp.float32),         # forward hidden states
            pltpu.VMEM((T, b_tile, hs), jnp.float32),         # backward hidden states
        ],
        compiler_params=pltpu.CompilerParams(
            dimension_semantics=("parallel",),
            vmem_limit_bytes=vmem_limit,
        ),
    )(x_in, wih2, whh2, b2, wfc2, bfc, gamma, beta)

    return out[:, :B, :F]


def ffb_reference(x, p):
    """Pure-JAX reference matching the PyTorch module semantics."""
    T, B, F = x.shape
    H = p["w_hh_f"].shape[1]

    def run(wih, whh, bih, bhh, reverse):
        xs = x[::-1] if reverse else x

        def step(carry, xt):
            h, c = carry
            g = xt @ wih.T + bih + h @ whh.T + bhh
            i = jax.nn.sigmoid(g[:, :H])
            f = jax.nn.sigmoid(g[:, H:2 * H])
            gg = jnp.tanh(g[:, 2 * H:3 * H])
            o = jax.nn.sigmoid(g[:, 3 * H:])
            c = f * c + i * gg
            h = o * jnp.tanh(c)
            return (h, c), h

        init = (jnp.zeros((B, H), jnp.float32), jnp.zeros((B, H), jnp.float32))
        _, ys = lax.scan(step, init, xs)
        return ys[::-1] if reverse else ys

    hf = run(p["w_ih_f"], p["w_hh_f"], p["b_ih_f"], p["b_hh_f"], False)
    hb = run(p["w_ih_b"], p["w_hh_b"], p["b_ih_b"], p["b_hh_b"], True)
    h = jnp.maximum(jnp.concatenate([hf, hb], axis=-1), 0.0)
    y = h @ p["w_fc"].T + p["b_fc"]
    y = y + x
    mean = jnp.mean(y, axis=(0, 2), keepdims=True)
    var = jnp.mean((y - mean) ** 2, axis=(0, 2), keepdims=True)
    yn = (y - mean) / jnp.sqrt(var + EPS)
    return yn * p["gamma"][None, None, :] + p["beta"][None, None, :]


if __name__ == "__main__":
    T, B, F, H = 8, 2, 16, 32   # (chunk length, batch rows, num_features, hidden_channels)

    key = jax.random.PRNGKey(0)
    ks = jax.random.split(key, 16)
    s_lstm = 1.0 / (H ** 0.5)
    s_fc = 1.0 / ((2 * H) ** 0.5)

    def u(k, shape, s):
        return jax.random.uniform(k, shape, jnp.float32, -s, s)

    params = {
        "w_ih_f": u(ks[0], (4 * H, F), s_lstm),
        "w_hh_f": u(ks[1], (4 * H, H), s_lstm),
        "b_ih_f": u(ks[2], (4 * H,), s_lstm),
        "b_hh_f": u(ks[3], (4 * H,), s_lstm),
        "w_ih_b": u(ks[4], (4 * H, F), s_lstm),
        "w_hh_b": u(ks[5], (4 * H, H), s_lstm),
        "b_ih_b": u(ks[6], (4 * H,), s_lstm),
        "b_hh_b": u(ks[7], (4 * H,), s_lstm),
        "w_fc": u(ks[8], (F, 2 * H), s_fc),
        "b_fc": u(ks[9], (F,), s_fc),
        "gamma": jnp.ones((F,), jnp.float32),
        "beta": jnp.zeros((F,), jnp.float32),
    }
    x = jax.random.normal(ks[10], (T, B, F), jnp.float32)

    ref = ffb_reference(x, params)

    # f32 path (bit-accurate vs. the PyTorch-style reference).
    out = jax.block_until_ready(feed_forward_block(x, params))
    assert out.shape == (T, B, F), out.shape
    assert jnp.allclose(out, ref, atol=2e-3, rtol=2e-3), float(jnp.max(jnp.abs(out - ref)))

    # bf16-storage fast path (v6e/v7x): x / weights / xp scratch in bf16, state,
    # accumulation and gLN in f32 -> looser tolerance for bf16 rounding.
    out_bf = jax.block_until_ready(
        feed_forward_block(x, params, storage_dtype=jnp.bfloat16))
    assert out_bf.shape == (T, B, F), out_bf.shape
    assert jnp.allclose(out_bf, ref, atol=7.5e-2, rtol=1e-2), \
        float(jnp.max(jnp.abs(out_bf - ref)))

    print("KERNEL_OK")
</pallas_src>

<mosaic_0001>
module attributes {stable_mosaic.version = 11 : i64} {
  func.func @_ffb_kernel(%arg0: i32, %arg1: memref<8x8x128xf32, #tpu.memory_space<vmem>>, %arg2: memref<128x256xf32, #tpu.memory_space<vmem>>, %arg3: memref<64x256xf32, #tpu.memory_space<vmem>>, %arg4: memref<1x256xf32, #tpu.memory_space<vmem>>, %arg5: memref<64x128xf32, #tpu.memory_space<vmem>>, %arg6: memref<1x128xf32, #tpu.memory_space<vmem>>, %arg7: memref<1x128xf32, #tpu.memory_space<vmem>>, %arg8: memref<1x128xf32, #tpu.memory_space<vmem>>, %arg9: memref<8x8x128xf32, #tpu.memory_space<vmem>>, %arg10: memref<8x8x256xf32, #tpu.memory_space<vmem>>, %arg11: memref<8x8x32xf32, #tpu.memory_space<vmem>>, %arg12: memref<8x8x32xf32, #tpu.memory_space<vmem>>) attributes {dimension_semantics = [#tpu.dimension_semantics<parallel>], iteration_bounds = array<i64: 1>, scalar_prefetch = 0 : i64, scratch_operands = 3 : i64, tpu.core_type = #tpu.core_type<tc>, window_params = [{transform_indices = @transform_0, window_bounds = array<i64: 8, 8, 128>}, {pipeline_mode = #tpu.pipeline_mode<synchronous>, transform_indices = @transform_1, window_bounds = array<i64: 128, 256>}, {pipeline_mode = #tpu.pipeline_mode<synchronous>, transform_indices = @transform_2, window_bounds = array<i64: 64, 256>}, {pipeline_mode = #tpu.pipeline_mode<synchronous>, transform_indices = @transform_3, window_bounds = array<i64: 1, 256>}, {pipeline_mode = #tpu.pipeline_mode<synchronous>, transform_indices = @transform_4, window_bounds = array<i64: 64, 128>}, {pipeline_mode = #tpu.pipeline_mode<synchronous>, transform_indices = @transform_5, window_bounds = array<i64: 1, 128>}, {pipeline_mode = #tpu.pipeline_mode<synchronous>, transform_indices = @transform_6, window_bounds = array<i64: 1, 128>}, {pipeline_mode = #tpu.pipeline_mode<synchronous>, transform_indices = @transform_7, window_bounds = array<i64: 1, 128>}, {transform_indices = @transform_8, window_bounds = array<i64: 8, 8, 128>}]} {
    %c0 = arith.constant 0 : index
    %c0_0 = arith.constant 0 : index
    %c0_1 = arith.constant 0 : index
    %0 = vector.load %arg1[%c0, %c0_0, %c0_1] : memref<8x8x128xf32, #tpu.memory_space<vmem>>, vector<8x8x128xf32>
    %1 = vector.shape_cast %0 : vector<8x8x128xf32> to vector<64x128xf32>
    %c0_2 = arith.constant 0 : index
    %c0_3 = arith.constant 0 : index
    %2 = vector.load %arg2[%c0_2, %c0_3] : memref<128x256xf32, #tpu.memory_space<vmem>>, vector<128x256xf32>
    %cst = arith.constant dense<0.000000e+00> : vector<64x256xf32>
    %3 = tpu.matmul %1, %2, %cst {dimension_numbers = #tpu.dot_dimension_numbers<[1], [0], [0], [1], [0, 0, 1, 1], [], []>} : vector<64x128xf32>, vector<128x256xf32>, vector<64x256xf32> -> vector<64x256xf32>
    %c0_4 = arith.constant 0 : index
    %c0_5 = arith.constant 0 : index
    %4 = vector.load %arg4[%c0_4, %c0_5] : memref<1x256xf32, #tpu.memory_space<vmem>>, vector<1x256xf32>
    %5 = vector.broadcast %4 : vector<1x256xf32> to vector<64x256xf32>
    %6 = arith.addf %3, %5 : vector<64x256xf32>
    %7 = vector.shape_cast %6 : vector<64x256xf32> to vector<8x8x256xf32>
    %c0_6 = arith.constant 0 : index
    %c0_7 = arith.constant 0 : index
    %c0_8 = arith.constant 0 : index
    %8 = vector.load %arg10[%c0_6, %c0_7, %c0_8] : memref<8x8x256xf32, #tpu.memory_space<vmem>>, vector<8x8x256xf32>
    tpu.vector_store %arg10[%c0_6, %c0_7, %c0_8], %7 {strides = array<i32>} : memref<8x8x256xf32, #tpu.memory_space<vmem>>, vector<8x8x256xf32>,
    %c0_9 = arith.constant 0 : index
    %c0_10 = arith.constant 0 : index
    %9 = vector.load %arg3[%c0_9, %c0_10] : memref<64x256xf32, #tpu.memory_space<vmem>>, vector<64x256xf32>
    %cst_11 = arith.constant 0.000000e+00 : f32
    %10 = vector.broadcast %cst_11 : f32 to vector<8x32xf32>
    %c0_i32 = arith.constant 0 : i32
    %c7_i32 = arith.constant 7 : i32
    %11 = arith.subi %c7_i32, %c0_i32 : i32
    %12 = tpu.concatenate %10, %10 in 1 : vector<8x32xf32>, vector<8x32xf32> -> vector<8x64xf32>
    %cst_12 = arith.constant dense<0.000000e+00> : vector<8x256xf32>
    %13 = tpu.matmul %12, %9, %cst_12 {dimension_numbers = #tpu.dot_dimension_numbers<[1], [0], [0], [1], [0, 0, 1, 1], [], []>} : vector<8x64xf32>, vector<64x256xf32>, vector<8x256xf32> -> vector<8x256xf32>
    %14 = arith.index_cast %c0_i32 : i32 to index
    %c0_13 = arith.constant 0 : index
    %c0_14 = arith.constant 0 : index
    %15 = vector.load %arg10[%14, %c0_13, %c0_14] : memref<8x8x256xf32, #tpu.memory_space<vmem>>, vector<1x8x256xf32>
    %16 = vector.shape_cast %15 : vector<1x8x256xf32> to vector<8x256xf32>
    %17 = arith.index_cast %11 : i32 to index
    %c0_15 = arith.constant 0 : index
    %c0_16 = arith.constant 0 : index
    %18 = vector.load %arg10[%17, %c0_15, %c0_16] : memref<8x8x256xf32, #tpu.memory_space<vmem>>, vector<1x8x256xf32>
    %19 = vector.shape_cast %18 : vector<1x8x256xf32> to vector<8x256xf32>
    %20 = vector.extract_strided_slice %16 {offsets = [0, 0], sizes = [8, 128], strides = [1, 1]} : vector<8x256xf32> to vector<8x128xf32>
    %21 = vector.extract_strided_slice %13 {offsets = [0, 0], sizes = [8, 128], strides = [1, 1]} : vector<8x256xf32> to vector<8x128xf32>
    %22 = arith.addf %20, %21 : vector<8x128xf32>
    %23 = vector.extract_strided_slice %22 {offsets = [0, 0], sizes = [8, 96], strides = [1, 1]} : vector<8x128xf32> to vector<8x96xf32>
    %24 = arith.negf %23 : vector<8x96xf32>
    %25 = math.exp %24 : vector<8x96xf32>
    %cst_17 = arith.constant 1.000000e+00 : f32
    %26 = vector.broadcast %cst_17 : f32 to vector<8x96xf32>
    %27 = arith.addf %26, %25 : vector<8x96xf32>
    %28 = arith.divf %26, %27 : vector<8x96xf32>
    %29 = vector.extract_strided_slice %28 {offsets = [0, 0], sizes = [8, 32], strides = [1, 1]} : vector<8x96xf32> to vector<8x32xf32>
    %30 = vector.extract_strided_slice %28 {offsets = [0, 32], sizes = [8, 32], strides = [1, 1]} : vector<8x96xf32> to vector<8x32xf32>
    %31 = vector.extract_strided_slice %28 {offsets = [0, 64], sizes = [8, 32], strides = [1, 1]} : vector<8x96xf32> to vector<8x32xf32>
    %32 = vector.extract_strided_slice %22 {offsets = [0, 96], sizes = [8, 32], strides = [1, 1]} : vector<8x128xf32> to vector<8x32xf32>
    %33 = math.tanh %32 : vector<8x32xf32>
    %34 = arith.mulf %30, %10 : vector<8x32xf32>
    %35 = arith.mulf %29, %33 : vector<8x32xf32>
    %36 = arith.addf %34, %35 : vector<8x32xf32>
    %37 = math.tanh %36 : vector<8x32xf32>
    %38 = arith.mulf %31, %37 : vector<8x32xf32>
    %39 = vector.extract_strided_slice %19 {offsets = [0, 128], sizes = [8, 128], strides = [1, 1]} : vector<8x256xf32> to vector<8x128xf32>
    %40 = vector.extract_strided_slice %13 {offsets = [0, 128], sizes = [8, 128], strides = [1, 1]} : vector<8x256xf32> to vector<8x128xf32>
    %41 = arith.addf %39, %40 : vector<8x128xf32>
    %42 = vector.extract_strided_slice %41 {offsets = [0, 0], sizes = [8, 96], strides = [1, 1]} : vector<8x128xf32> to vector<8x96xf32>
    %43 = arith.negf %42 : vector<8x96xf32>
    %44 = math.exp %43 : vector<8x96xf32>
    %cst_18 = arith.constant 1.000000e+00 : f32
    %45 = vector.broadcast %cst_18 : f32 to vector<8x96xf32>
    %46 = arith.addf %45, %44 : vector<8x96xf32>
    %47 = arith.divf %45, %46 : vector<8x96xf32>
    %48 = vector.extract_strided_slice %47 {offsets = [0, 0], sizes = [8, 32], strides = [1, 1]} : vector<8x96xf32> to vector<8x32xf32>
    %49 = vector.extract_strided_slice %47 {offsets = [0, 32], sizes = [8, 32], strides = [1, 1]} : vector<8x96xf32> to vector<8x32xf32>
    %50 = vector.extract_strided_slice %47 {offsets = [0, 64], sizes = [8, 32], strides = [1, 1]} : vector<8x96xf32> to vector<8x32xf32>
    %51 = vector.extract_strided_slice %41 {offsets = [0, 96], sizes = [8, 32], strides = [1, 1]} : vector<8x128xf32> to vector<8x32xf32>
    %52 = math.tanh %51 : vector<8x32xf32>
    %53 = arith.mulf %49, %10 : vector<8x32xf32>
    %54 = arith.mulf %48, %52 : vector<8x32xf32>
    %55 = arith.addf %53, %54 : vector<8x32xf32>
    %56 = math.tanh %55 : vector<8x32xf32>
    %57 = arith.mulf %50, %56 : vector<8x32xf32>
    %58 = arith.index_cast %c0_i32 : i32 to index
    %c0_19 = arith.constant 0 : index
    %c0_20 = arith.constant 0 : index
    %59 = vector.load %arg11[%58, %c0_19, %c0_20] : memref<8x8x32xf32, #tpu.memory_space<vmem>>, vector<1x8x32xf32>
    %60 = vector.shape_cast %59 : vector<1x8x32xf32> to vector<8x32xf32>
    %61 = vector.shape_cast %38 : vector<8x32xf32> to vector<1x8x32xf32>
    tpu.vector_store %arg11[%58, %c0_19, %c0_20], %61 {strides = array<i32>} : memref<8x8x32xf32, #tpu.memory_space<vmem>>, vector<1x8x32xf32>,
    %62 = arith.index_cast %11 : i32 to index
    %c0_21 = arith.constant 0 : index
    %c0_22 = arith.constant 0 : index
    %63 = vector.load %arg12[%62, %c0_21, %c0_22] : memref<8x8x32xf32, #tpu.memory_space<vmem>>, vector<1x8x32xf32>
    %64 = vector.shape_cast %63 : vector<1x8x32xf32> to vector<8x32xf32>
    %65 = vector.shape_cast %57 : vector<8x32xf32> to vector<1x8x32xf32>
    tpu.vector_store %arg12[%62, %c0_21, %c0_22], %65 {strides = array<i32>} : memref<8x8x32xf32, #tpu.memory_space<vmem>>, vector<1x8x32xf32>,
    %c1_i32 = arith.constant 1 : i32
    %c7_i32_23 = arith.constant 7 : i32
    %66 = arith.subi %c7_i32_23, %c1_i32 : i32
    %67 = tpu.concatenate %38, %57 in 1 : vector<8x32xf32>, vector<8x32xf32> -> vector<8x64xf32>
    %cst_24 = arith.constant dense<0.000000e+00> : vector<8x256xf32>
    %68 = tpu.matmul %67, %9, %cst_24 {dimension_numbers = #tpu.dot_dimension_numbers<[1], [0], [0], [1], [0, 0, 1, 1], [], []>} : vector<8x64xf32>, vector<64x256xf32>, vector<8x256xf32> -> vector<8x256xf32>
    %69 = arith.index_cast %c1_i32 : i32 to index
    %c0_25 = arith.constant 0 : index
    %c0_26 = arith.constant 0 : index
    %70 = vector.load %arg10[%69, %c0_25, %c0_26] : memref<8x8x256xf32, #tpu.memory_space<vmem>>, vector<1x8x256xf32>
    %71 = vector.shape_cast %70 : vector<1x8x256xf32> to vector<8x256xf32>
    %72 = arith.index_cast %66 : i32 to index
    %c0_27 = arith.constant 0 : index
    %c0_28 = arith.constant 0 : index
    %73 = vector.load %arg10[%72, %c0_27, %c0_28] : memref<8x8x256xf32, #tpu.memory_space<vmem>>, vector<1x8x256xf32>
    %74 = vector.shape_cast %73 : vector<1x8x256xf32> to vector<8x256xf32>
    %75 = vector.extract_strided_slice %71 {offsets = [0, 0], sizes = [8, 128], strides = [1, 1]} : vector<8x256xf32> to vector<8x128xf32>
    %76 = vector.extract_strided_slice %68 {offsets = [0, 0], sizes = [8, 128], strides = [1, 1]} : vector<8x256xf32> to vector<8x128xf32>
    %77 = arith.addf %75, %76 : vector<8x128xf32>
    %78 = vector.extract_strided_slice %77 {offsets = [0, 0], sizes = [8, 96], strides = [1, 1]} : vector<8x128xf32> to vector<8x96xf32>
    %79 = arith.negf %78 : vector<8x96xf32>
    %80 = math.exp %79 : vector<8x96xf32>
    %cst_29 = arith.constant 1.000000e+00 : f32
    %81 = vector.broadcast %cst_29 : f32 to vector<8x96xf32>
    %82 = arith.addf %81, %80 : vector<8x96xf32>
    %83 = arith.divf %81, %82 : vector<8x96xf32>
    %84 = vector.extract_strided_slice %83 {offsets = [0, 0], sizes = [8, 32], strides = [1, 1]} : vector<8x96xf32> to vector<8x32xf32>
    %85 = vector.extract_strided_slice %83 {offsets = [0, 32], sizes = [8, 32], strides = [1, 1]} : vector<8x96xf32> to vector<8x32xf32>
    %86 = vector.extract_strided_slice %83 {offsets = [0, 64], sizes = [8, 32], strides = [1, 1]} : vector<8x96xf32> to vector<8x32xf32>
    %87 = vector.extract_strided_slice %77 {offsets = [0, 96], sizes = [8, 32], strides = [1, 1]} : vector<8x128xf32> to vector<8x32xf32>
    %88 = math.tanh %87 : vector<8x32xf32>
    %89 = arith.mulf %85, %36 : vector<8x32xf32>
    %90 = arith.mulf %84, %88 : vector<8x32xf32>
    %91 = arith.addf %89, %90 : vector<8x32xf32>
    %92 = math.tanh %91 : vector<8x32xf32>
    %93 = arith.mulf %86, %92 : vector<8x32xf32>
    %94 = vector.extract_strided_slice %74 {offsets = [0, 128], sizes = [8, 128], strides = [1, 1]} : vector<8x256xf32> to vector<8x128xf32>
    %95 = vector.extract_strided_slice %68 {offsets = [0, 128], sizes = [8, 128], strides = [1, 1]} : vector<8x256xf32> to vector<8x128xf32>
    %96 = arith.addf %94, %95 : vector<8x128xf32>
    %97 = vector.extract_strided_slice %96 {offsets = [0, 0], sizes = [8, 96], strides = [1, 1]} : vector<8x128xf32> to vector<8x96xf32>
    %98 = arith.negf %97 : vector<8x96xf32>
    %99 = math.exp %98 : vector<8x96xf32>
    %cst_30 = arith.constant 1.000000e+00 : f32
    %100 = vector.broadcast %cst_30 : f32 to vector<8x96xf32>
    %101 = arith.addf %100, %99 : vector<8x96xf32>
    %102 = arith.divf %100, %101 : vector<8x96xf32>
    %103 = vector.extract_strided_slice %102 {offsets = [0, 0], sizes = [8, 32], strides = [1, 1]} : vector<8x96xf32> to vector<8x32xf32>
    %104 = vector.extract_strided_slice %102 {offsets = [0, 32], sizes = [8, 32], strides = [1, 1]} : vector<8x96xf32> to vector<8x32xf32>
    %105 = vector.extract_strided_slice %102 {offsets = [0, 64], sizes = [8, 32], strides = [1, 1]} : vector<8x96xf32> to vector<8x32xf32>
    %106 = vector.extract_strided_slice %96 {offsets = [0, 96], sizes = [8, 32], strides = [1, 1]} : vector<8x128xf32> to vector<8x32xf32>
    %107 = math.tanh %106 : vector<8x32xf32>
    %108 = arith.mulf %104, %55 : vector<8x32xf32>
    %109 = arith.mulf %103, %107 : vector<8x32xf32>
    %110 = arith.addf %108, %109 : vector<8x32xf32>
    %111 = math.tanh %110 : vector<8x32xf32>
    %112 = arith.mulf %105, %111 : vector<8x32xf32>
    %113 = arith.index_cast %c1_i32 : i32 to index
    %c0_31 = arith.constant 0 : index
    %c0_32 = arith.constant 0 : index
    %114 = vector.load %arg11[%113, %c0_31, %c0_32] : memref<8x8x32xf32, #tpu.memory_space<vmem>>, vector<1x8x32xf32>
    %115 = vector.shape_cast %114 : vector<1x8x32xf32> to vector<8x32xf32>
    %116 = vector.shape_cast %93 : vector<8x32xf32> to vector<1x8x32xf32>
    tpu.vector_store %arg11[%113, %c0_31, %c0_32], %116 {strides = array<i32>} : memref<8x8x32xf32, #tpu.memory_space<vmem>>, vector<1x8x32xf32>,
    %117 = arith.index_cast %66 : i32 to index
    %c0_33 = arith.constant 0 : index
    %c0_34 = arith.constant 0 : index
    %118 = vector.load %arg12[%117, %c0_33, %c0_34] : memref<8x8x32xf32, #tpu.memory_space<vmem>>, vector<1x8x32xf32>
    %119 = vector.shape_cast %118 : vector<1x8x32xf32> to vector<8x32xf32>
    %120 = vector.shape_cast %112 : vector<8x32xf32> to vector<1x8x32xf32>
    tpu.vector_store %arg12[%117, %c0_33, %c0_34], %120 {strides = array<i32>} : memref<8x8x32xf32, #tpu.memory_space<vmem>>, vector<1x8x32xf32>,
    %c2_i32 = arith.constant 2 : i32
    %c7_i32_35 = arith.constant 7 : i32
    %121 = arith.subi %c7_i32_35, %c2_i32 : i32
    %122 = tpu.concatenate %93, %112 in 1 : vector<8x32xf32>, vector<8x32xf32> -> vector<8x64xf32>
    %cst_36 = arith.constant dense<0.000000e+00> : vector<8x256xf32>
    %123 = tpu.matmul %122, %9, %cst_36 {dimension_numbers = #tpu.dot_dimension_numbers<[1], [0], [0], [1], [0, 0, 1, 1], [], []>} : vector<8x64xf32>, vector<64x256xf32>, vector<8x256xf32> -> vector<8x256xf32>
    %124 = arith.index_cast %c2_i32 : i32 to index
    %c0_37 = arith.constant 0 : index
    %c0_38 = arith.constant 0 : index
    %125 = vector.load %arg10[%124, %c0_37, %c0_38] : memref<8x8x256xf32, #tpu.memory_space<vmem>>, vector<1x8x256xf32>
    %126 = vector.shape_cast %125 : vector<1x8x256xf32> to vector<8x256xf32>
    %127 = arith.index_cast %121 : i32 to index
    %c0_39 = arith.constant 0 : index
    %c0_40 = arith.constant 0 : index
    %128 = vector.load %arg10[%127, %c0_39, %c0_40] : memref<8x8x256xf32, #tpu.memory_space<vmem>>, vector<1x8x256xf32>
    %129 = vector.shape_cast %128 : vector<1x8x256xf32> to vector<8x256xf32>
    %130 = vector.extract_strided_slice %126 {offsets = [0, 0], sizes = [8, 128], strides = [1, 1]} : vector<8x256xf32> to vector<8x128xf32>
    %131 = vector.extract_strided_slice %123 {offsets = [0, 0], sizes = [8, 128], strides = [1, 1]} : vector<8x256xf32> to vector<8x128xf32>
    %132 = arith.addf %130, %131 : vector<8x128xf32>
    %133 = vector.extract_strided_slice %132 {offsets = [0, 0], sizes = [8, 96], strides = [1, 1]} : vector<8x128xf32> to vector<8x96xf32>
    %134 = arith.negf %133 : vector<8x96xf32>
    %135 = math.exp %134 : vector<8x96xf32>
    %cst_41 = arith.constant 1.000000e+00 : f32
    %136 = vector.broadcast %cst_41 : f32 to vector<8x96xf32>
    %137 = arith.addf %136, %135 : vector<8x96xf32>
    %138 = arith.divf %136, %137 : vector<8x96xf32>
    %139 = vector.extract_strided_slice %138 {offsets = [0, 0], sizes = [8, 32], strides = [1, 1]} : vector<8x96xf32> to vector<8x32xf32>
    %140 = vector.extract_strided_slice %138 {offsets = [0, 32], sizes = [8, 32], strides = [1, 1]} : vector<8x96xf32> to vector<8x32xf32>
    %141 = vector.extract_strided_slice %138 {offsets = [0, 64], sizes = [8, 32], strides = [1, 1]} : vector<8x96xf32> to vector<8x32xf32>
    %142 = vector.extract_strided_slice %132 {offsets = [0, 96], sizes = [8, 32], strides = [1, 1]} : vector<8x128xf32> to vector<8x32xf32>
    %143 = math.tanh %142 : vector<8x32xf32>
    %144 = arith.mulf %140, %91 : vector<8x32xf32>
    %145 = arith.mulf %139, %143 : vector<8x32xf32>
    %146 = arith.addf %144, %145 : vector<8x32xf32>
    %147 = math.tanh %146 : vector<8x32xf32>
    %148 = arith.mulf %141, %147 : vector<8x32xf32>
    %149 = vector.extract_strided_slice %129 {offsets = [0, 128], sizes = [8, 128], strides = [1, 1]} : vector<8x256xf32> to vector<8x128xf32>
    %150 = vector.extract_strided_slice %123 {offsets = [0, 128], sizes = [8, 128], strides = [1, 1]} : vector<8x256xf32> to vector<8x128xf32>
    %151 = arith.addf %149, %150 : vector<8x128xf32>
    %152 = vector.extract_strided_slice %151 {offsets = [0, 0], sizes = [8, 96], strides = [1, 1]} : vector<8x128xf32> to vector<8x96xf32>
    %153 = arith.negf %152 : vector<8x96xf32>
    %154 = math.exp %153 : vector<8x96xf32>
    %cst_42 = arith.constant 1.000000e+00 : f32
    %155 = vector.broadcast %cst_42 : f32 to vector<8x96xf32>
    %156 = arith.addf %155, %154 : vector<8x96xf32>
    %157 = arith.divf %155, %156 : vector<8x96xf32>
    %158 = vector.extract_strided_slice %157 {offsets = [0, 0], sizes = [8, 32], strides = [1, 1]} : vector<8x96xf32> to vector<8x32xf32>
    %159 = vector.extract_strided_slice %157 {offsets = [0, 32], sizes = [8, 32], strides = [1, 1]} : vector<8x96xf32> to vector<8x32xf32>
    %160 = vector.extract_strided_slice %157 {offsets = [0, 64], sizes = [8, 32], strides = [1, 1]} : vector<8x96xf32> to vector<8x32xf32>
    %161 = vector.extract_strided_slice %151 {offsets = [0, 96], sizes = [8, 32], strides = [1, 1]} : vector<8x128xf32> to vector<8x32xf32>
    %162 = math.tanh %161 : vector<8x32xf32>
    %163 = arith.mulf %159, %110 : vector<8x32xf32>
    %164 = arith.mulf %158, %162 : vector<8x32xf32>
    %165 = arith.addf %163, %164 : vector<8x32xf32>
    %166 = math.tanh %165 : vector<8x32xf32>
    %167 = arith.mulf %160, %166 : vector<8x32xf32>
    %168 = arith.index_cast %c2_i32 : i32 to index
    %c0_43 = arith.constant 0 : index
    %c0_44 = arith.constant 0 : index
    %169 = vector.load %arg11[%168, %c0_43, %c0_44] : memref<8x8x32xf32, #tpu.memory_space<vmem>>, vector<1x8x32xf32>
    %170 = vector.shape_cast %169 : vector<1x8x32xf32> to vector<8x32xf32>
    %171 = vector.shape_cast %148 : vector<8x32xf32> to vector<1x8x32xf32>
    tpu.vector_store %arg11[%168, %c0_43, %c0_44], %171 {strides = array<i32>} : memref<8x8x32xf32, #tpu.memory_space<vmem>>, vector<1x8x32xf32>,
    %172 = arith.index_cast %121 : i32 to index
    %c0_45 = arith.constant 0 : index
    %c0_46 = arith.constant 0 : index
    %173 = vector.load %arg12[%172, %c0_45, %c0_46] : memref<8x8x32xf32, #tpu.memory_space<vmem>>, vector<1x8x32xf32>
    %174 = vector.shape_cast %173 : vector<1x8x32xf32> to vector<8x32xf32>
    %175 = vector.shape_cast %167 : vector<8x32xf32> to vector<1x8x32xf32>
    tpu.vector_store %arg12[%172, %c0_45, %c0_46], %175 {strides = array<i32>} : memref<8x8x32xf32, #tpu.memory_space<vmem>>, vector<1x8x32xf32>,
    %c3_i32 = arith.constant 3 : i32
    %c7_i32_47 = arith.constant 7 : i32
    %176 = arith.subi %c7_i32_47, %c3_i32 : i32
    %177 = tpu.concatenate %148, %167 in 1 : vector<8x32xf32>, vector<8x32xf32> -> vector<8x64xf32>
    %cst_48 = arith.constant dense<0.000000e+00> : vector<8x256xf32>
    %178 = tpu.matmul %177, %9, %cst_48 {dimension_numbers = #tpu.dot_dimension_numbers<[1], [0], [0], [1], [0, 0, 1, 1], [], []>} : vector<8x64xf32>, vector<64x256xf32>, vector<8x256xf32> -> vector<8x256xf32>
    %179 = arith.index_cast %c3_i32 : i32 to index
    %c0_49 = arith.constant 0 : index
    %c0_50 = arith.constant 0 : index
    %180 = vector.load %arg10[%179, %c0_49, %c0_50] : memref<8x8x256xf32, #tpu.memory_space<vmem>>, vector<1x8x256xf32>
    %181 = vector.shape_cast %180 : vector<1x8x256xf32> to vector<8x256xf32>
    %182 = arith.index_cast %176 : i32 to index
    %c0_51 = arith.constant 0 : index
    %c0_52 = arith.constant 0 : index
    %183 = vector.load %arg10[%182, %c0_51, %c0_52] : memref<8x8x256xf32, #tpu.memory_space<vmem>>, vector<1x8x256xf32>
    %184 = vector.shape_cast %183 : vector<1x8x256xf32> to vector<8x256xf32>
    %185 = vector.extract_strided_slice %181 {offsets = [0, 0], sizes = [8, 128], strides = [1, 1]} : vector<8x256xf32> to vector<8x128xf32>
    %186 = vector.extract_strided_slice %178 {offsets = [0, 0], sizes = [8, 128], strides = [1, 1]} : vector<8x256xf32> to vector<8x128xf32>
    %187 = arith.addf %185, %186 : vector<8x128xf32>
    %188 = vector.extract_strided_slice %187 {offsets = [0, 0], sizes = [8, 96], strides = [1, 1]} : vector<8x128xf32> to vector<8x96xf32>
    %189 = arith.negf %188 : vector<8x96xf32>
    %190 = math.exp %189 : vector<8x96xf32>
    %cst_53 = arith.constant 1.000000e+00 : f32
    %191 = vector.broadcast %cst_53 : f32 to vector<8x96xf32>
    %192 = arith.addf %191, %190 : vector<8x96xf32>
    %193 = arith.divf %191, %192 : vector<8x96xf32>
    %194 = vector.extract_strided_slice %193 {offsets = [0, 0], sizes = [8, 32], strides = [1, 1]} : vector<8x96xf32> to vector<8x32xf32>
    %195 = vector.extract_strided_slice %193 {offsets = [0, 32], sizes = [8, 32], strides = [1, 1]} : vector<8x96xf32> to vector<8x32xf32>
    %196 = vector.extract_strided_slice %193 {offsets = [0, 64], sizes = [8, 32], strides = [1, 1]} : vector<8x96xf32> to vector<8x32xf32>
    %197 = vector.extract_strided_slice %187 {offsets = [0, 96], sizes = [8, 32], strides = [1, 1]} : vector<8x128xf32> to vector<8x32xf32>
    %198 = math.tanh %197 : vector<8x32xf32>
    %199 = arith.mulf %195, %146 : vector<8x32xf32>
    %200 = arith.mulf %194, %198 : vector<8x32xf32>
    %201 = arith.addf %199, %200 : vector<8x32xf32>
    %202 = math.tanh %201 : vector<8x32xf32>
    %203 = arith.mulf %196, %202 : vector<8x32xf32>
    %204 = vector.extract_strided_slice %184 {offsets = [0, 128], sizes = [8, 128], strides = [1, 1]} : vector<8x256xf32> to vector<8x128xf32>
    %205 = vector.extract_strided_slice %178 {offsets = [0, 128], sizes = [8, 128], strides = [1, 1]} : vector<8x256xf32> to vector<8x128xf32>
    %206 = arith.addf %204, %205 : vector<8x128xf32>
    %207 = vector.extract_strided_slice %206 {offsets = [0, 0], sizes = [8, 96], strides = [1, 1]} : vector<8x128xf32> to vector<8x96xf32>
    %208 = arith.negf %207 : vector<8x96xf32>
    %209 = math.exp %208 : vector<8x96xf32>
    %cst_54 = arith.constant 1.000000e+00 : f32
    %210 = vector.broadcast %cst_54 : f32 to vector<8x96xf32>
    %211 = arith.addf %210, %209 : vector<8x96xf32>
    %212 = arith.divf %210, %211 : vector<8x96xf32>
    %213 = vector.extract_strided_slice %212 {offsets = [0, 0], sizes = [8, 32], strides = [1, 1]} : vector<8x96xf32> to vector<8x32xf32>
    %214 = vector.extract_strided_slice %212 {offsets = [0, 32], sizes = [8, 32], strides = [1, 1]} : vector<8x96xf32> to vector<8x32xf32>
    %215 = vector.extract_strided_slice %212 {offsets = [0, 64], sizes = [8, 32], strides = [1, 1]} : vector<8x96xf32> to vector<8x32xf32>
    %216 = vector.extract_strided_slice %206 {offsets = [0, 96], sizes = [8, 32], strides = [1, 1]} : vector<8x128xf32> to vector<8x32xf32>
    %217 = math.tanh %216 : vector<8x32xf32>
    %218 = arith.mulf %214, %165 : vector<8x32xf32>
    %219 = arith.mulf %213, %217 : vector<8x32xf32>
    %220 = arith.addf %218, %219 : vector<8x32xf32>
    %221 = math.tanh %220 : vector<8x32xf32>
    %222 = arith.mulf %215, %221 : vector<8x32xf32>
    %223 = arith.index_cast %c3_i32 : i32 to index
    %c0_55 = arith.constant 0 : index
    %c0_56 = arith.constant 0 : index
    %224 = vector.load %arg11[%223, %c0_55, %c0_56] : memref<8x8x32xf32, #tpu.memory_space<vmem>>, vector<1x8x32xf32>
    %225 = vector.shape_cast %224 : vector<1x8x32xf32> to vector<8x32xf32>
    %226 = vector.shape_cast %203 : vector<8x32xf32> to vector<1x8x32xf32>
    tpu.vector_store %arg11[%223, %c0_55, %c0_56], %226 {strides = array<i32>} : memref<8x8x32xf32, #tpu.memory_space<vmem>>, vector<1x8x32xf32>,
    %227 = arith.index_cast %176 : i32 to index
    %c0_57 = arith.constant 0 : index
    %c0_58 = arith.constant 0 : index
    %228 = vector.load %arg12[%227, %c0_57, %c0_58] : memref<8x8x32xf32, #tpu.memory_space<vmem>>, vector<1x8x32xf32>
    %229 = vector.shape_cast %228 : vector<1x8x32xf32> to vector<8x32xf32>
    %230 = vector.shape_cast %222 : vector<8x32xf32> to vector<1x8x32xf32>
    tpu.vector_store %arg12[%227, %c0_57, %c0_58], %230 {strides = array<i32>} : memref<8x8x32xf32, #tpu.memory_space<vmem>>, vector<1x8x32xf32>,
    %c4_i32 = arith.constant 4 : i32
    %c7_i32_59 = arith.constant 7 : i32
    %231 = arith.subi %c7_i32_59, %c4_i32 : i32
    %232 = tpu.concatenate %203, %222 in 1 : vector<8x32xf32>, vector<8x32xf32> -> vector<8x64xf32>
    %cst_60 = arith.constant dense<0.000000e+00> : vector<8x256xf32>
    %233 = tpu.matmul %232, %9, %cst_60 {dimension_numbers = #tpu.dot_dimension_numbers<[1], [0], [0], [1], [0, 0, 1, 1], [], []>} : vector<8x64xf32>, vector<64x256xf32>, vector<8x256xf32> -> vector<8x256xf32>
    %234 = arith.index_cast %c4_i32 : i32 to index
    %c0_61 = arith.constant 0 : index
    %c0_62 = arith.constant 0 : index
    %235 = vector.load %arg10[%234, %c0_61, %c0_62] : memref<8x8x256xf32, #tpu.memory_space<vmem>>, vector<1x8x256xf32>
    %236 = vector.shape_cast %235 : vector<1x8x256xf32> to vector<8x256xf32>
    %237 = arith.index_cast %231 : i32 to index
    %c0_63 = arith.constant 0 : index
    %c0_64 = arith.constant 0 : index
    %238 = vector.load %arg10[%237, %c0_63, %c0_64] : memref<8x8x256xf32, #tpu.memory_space<vmem>>, vector<1x8x256xf32>
    %239 = vector.shape_cast %238 : vector<1x8x256xf32> to vector<8x256xf32>
    %240 = vector.extract_strided_slice %236 {offsets = [0, 0], sizes = [8, 128], strides = [1, 1]} : vector<8x256xf32> to vector<8x128xf32>
    %241 = vector.extract_strided_slice %233 {offsets = [0, 0], sizes = [8, 128], strides = [1, 1]} : vector<8x256xf32> to vector<8x128xf32>
    %242 = arith.addf %240, %241 : vector<8x128xf32>
    %243 = vector.extract_strided_slice %242 {offsets = [0, 0], sizes = [8, 96], strides = [1, 1]} : vector<8x128xf32> to vector<8x96xf32>
    %244 = arith.negf %243 : vector<8x96xf32>
    %245 = math.exp %244 : vector<8x96xf32>
    %cst_65 = arith.constant 1.000000e+00 : f32
    %246 = vector.broadcast %cst_65 : f32 to vector<8x96xf32>
    %247 = arith.addf %246, %245 : vector<8x96xf32>
    %248 = arith.divf %246, %247 : vector<8x96xf32>
    %249 = vector.extract_strided_slice %248 {offsets = [0, 0], sizes = [8, 32], strides = [1, 1]} : vector<8x96xf32> to vector<8x32xf32>
    %250 = vector.extract_strided_slice %248 {offsets = [0, 32], sizes = [8, 32], strides = [1, 1]} : vector<8x96xf32> to vector<8x32xf32>
    %251 = vector.extract_strided_slice %248 {offsets = [0, 64], sizes = [8, 32], strides = [1, 1]} : vector<8x96xf32> to vector<8x32xf32>
    %252 = vector.extract_strided_slice %242 {offsets = [0, 96], sizes = [8, 32], strides = [1, 1]} : vector<8x128xf32> to vector<8x32xf32>
    %253 = math.tanh %252 : vector<8x32xf32>
    %254 = arith.mulf %250, %201 : vector<8x32xf32>
    %255 = arith.mulf %249, %253 : vector<8x32xf32>
    %256 = arith.addf %254, %255 : vector<8x32xf32>
    %257 = math.tanh %256 : vector<8x32xf32>
    %258 = arith.mulf %251, %257 : vector<8x32xf32>
    %259 = vector.extract_strided_slice %239 {offsets = [0, 128], sizes = [8, 128], strides = [1, 1]} : vector<8x256xf32> to vector<8x128xf32>
    %260 = vector.extract_strided_slice %233 {offsets = [0, 128], sizes = [8, 128], strides = [1, 1]} : vector<8x256xf32> to vector<8x128xf32>
    %261 = arith.addf %259, %260 : vector<8x128xf32>
    %262 = vector.extract_strided_slice %261 {offsets = [0, 0], sizes = [8, 96], strides = [1, 1]} : vector<8x128xf32> to vector<8x96xf32>
    %263 = arith.negf %262 : vector<8x96xf32>
    %264 = math.exp %263 : vector<8x96xf32>
    %cst_66 = arith.constant 1.000000e+00 : f32
    %265 = vector.broadcast %cst_66 : f32 to vector<8x96xf32>
    %266 = arith.addf %265, %264 : vector<8x96xf32>
    %267 = arith.divf %265, %266 : vector<8x96xf32>
    %268 = vector.extract_strided_slice %267 {offsets = [0, 0], sizes = [8, 32], strides = [1, 1]} : vector<8x96xf32> to vector<8x32xf32>
    %269 = vector.extract_strided_slice %267 {offsets = [0, 32], sizes = [8, 32], strides = [1, 1]} : vector<8x96xf32> to vector<8x32xf32>
    %270 = vector.extract_strided_slice %267 {offsets = [0, 64], sizes = [8, 32], strides = [1, 1]} : vector<8x96xf32> to vector<8x32xf32>
    %271 = vector.extract_strided_slice %261 {offsets = [0, 96], sizes = [8, 32], strides = [1, 1]} : vector<8x128xf32> to vector<8x32xf32>
    %272 = math.tanh %271 : vector<8x32xf32>
    %273 = arith.mulf %269, %220 : vector<8x32xf32>
    %274 = arith.mulf %268, %272 : vector<8x32xf32>
    %275 = arith.addf %273, %274 : vector<8x32xf32>
    %276 = math.tanh %275 : vector<8x32xf32>
    %277 = arith.mulf %270, %276 : vector<8x32xf32>
    %278 = arith.index_cast %c4_i32 : i32 to index
    %c0_67 = arith.constant 0 : index
    %c0_68 = arith.constant 0 : index
    %279 = vector.load %arg11[%278, %c0_67, %c0_68] : memref<8x8x32xf32, #tpu.memory_space<vmem>>, vector<1x8x32xf32>
    %280 = vector.shape_cast %279 : vector<1x8x32xf32> to vector<8x32xf32>
    %281 = vector.shape_cast %258 : vector<8x32xf32> to vector<1x8x32xf32>
    tpu.vector_store %arg11[%278, %c0_67, %c0_68], %281 {strides = array<i32>} : memref<8x8x32xf32, #tpu.memory_space<vmem>>, vector<1x8x32xf32>,
    %282 = arith.index_cast %231 : i32 to index
    %c0_69 = arith.constant 0 : index
    %c0_70 = arith.constant 0 : index
    %283 = vector.load %arg12[%282, %c0_69, %c0_70] : memref<8x8x32xf32, #tpu.memory_space<vmem>>, vector<1x8x32xf32>
    %284 = vector.shape_cast %283 : vector<1x8x32xf32> to vector<8x32xf32>
    %285 = vector.shape_cast %277 : vector<8x32xf32> to vector<1x8x32xf32>
    tpu.vector_store %arg12[%282, %c0_69, %c0_70], %285 {strides = array<i32>} : memref<8x8x32xf32, #tpu.memory_space<vmem>>, vector<1x8x32xf32>,
    %c5_i32 = arith.constant 5 : i32
    %c7_i32_71 = arith.constant 7 : i32
    %286 = arith.subi %c7_i32_71, %c5_i32 : i32
    %287 = tpu.concatenate %258, %277 in 1 : vector<8x32xf32>, vector<8x32xf32> -> vector<8x64xf32>
    %cst_72 = arith.constant dense<0.000000e+00> : vector<8x256xf32>
    %288 = tpu.matmul %287, %9, %cst_72 {dimension_numbers = #tpu.dot_dimension_numbers<[1], [0], [0], [1], [0, 0, 1, 1], [], []>} : vector<8x64xf32>, vector<64x256xf32>, vector<8x256xf32> -> vector<8x256xf32>
    %289 = arith.index_cast %c5_i32 : i32 to index
    %c0_73 = arith.constant 0 : index
    %c0_74 = arith.constant 0 : index
    %290 = vector.load %arg10[%289, %c0_73, %c0_74] : memref<8x8x256xf32, #tpu.memory_space<vmem>>, vector<1x8x256xf32>
    %291 = vector.shape_cast %290 : vector<1x8x256xf32> to vector<8x256xf32>
    %292 = arith.index_cast %286 : i32 to index
    %c0_75 = arith.constant 0 : index
    %c0_76 = arith.constant 0 : index
    %293 = vector.load %arg10[%292, %c0_75, %c0_76] : memref<8x8x256xf32, #tpu.memory_space<vmem>>, vector<1x8x256xf32>
    %294 = vector.shape_cast %293 : vector<1x8x256xf32> to vector<8x256xf32>
    %295 = vector.extract_strided_slice %291 {offsets = [0, 0], sizes = [8, 128], strides = [1, 1]} : vector<8x256xf32> to vector<8x128xf32>
    %296 = vector.extract_strided_slice %288 {offsets = [0, 0], sizes = [8, 128], strides = [1, 1]} : vector<8x256xf32> to vector<8x128xf32>
    %297 = arith.addf %295, %296 : vector<8x128xf32>
    %298 = vector.extract_strided_slice %297 {offsets = [0, 0], sizes = [8, 96], strides = [1, 1]} : vector<8x128xf32> to vector<8x96xf32>
    %299 = arith.negf %298 : vector<8x96xf32>
    %300 = math.exp %299 : vector<8x96xf32>
    %cst_77 = arith.constant 1.000000e+00 : f32
    %301 = vector.broadcast %cst_77 : f32 to vector<8x96xf32>
    %302 = arith.addf %301, %300 : vector<8x96xf32>
    %303 = arith.divf %301, %302 : vector<8x96xf32>
    %304 = vector.extract_strided_slice %303 {offsets = [0, 0], sizes = [8, 32], strides = [1, 1]} : vector<8x96xf32> to vector<8x32xf32>
    %305 = vector.extract_strided_slice %303 {offsets = [0, 32], sizes = [8, 32], strides = [1, 1]} : vector<8x96xf32> to vector<8x32xf32>
    %306 = vector.extract_strided_slice %303 {offsets = [0, 64], sizes = [8, 32], strides = [1, 1]} : vector<8x96xf32> to vector<8x32xf32>
    %307 = vector.extract_strided_slice %297 {offsets = [0, 96], sizes = [8, 32], strides = [1, 1]} : vector<8x128xf32> to vector<8x32xf32>
    %308 = math.tanh %307 : vector<8x32xf32>
    %309 = arith.mulf %305, %256 : vector<8x32xf32>
    %310 = arith.mulf %304, %308 : vector<8x32xf32>
    %311 = arith.addf %309, %310 : vector<8x32xf32>
    %312 = math.tanh %311 : vector<8x32xf32>
    %313 = arith.mulf %306, %312 : vector<8x32xf32>
    %314 = vector.extract_strided_slice %294 {offsets = [0, 128], sizes = [8, 128], strides = [1, 1]} : vector<8x256xf32> to vector<8x128xf32>
    %315 = vector.extract_strided_slice %288 {offsets = [0, 128], sizes = [8, 128], strides = [1, 1]} : vector<8x256xf32> to vector<8x128xf32>
    %316 = arith.addf %314, %315 : vector<8x128xf32>
    %317 = vector.extract_strided_slice %316 {offsets = [0, 0], sizes = [8, 96], strides = [1, 1]} : vector<8x128xf32> to vector<8x96xf32>
    %318 = arith.negf %317 : vector<8x96xf32>
    %319 = math.exp %318 : vector<8x96xf32>
    %cst_78 = arith.constant 1.000000e+00 : f32
    %320 = vector.broadcast %cst_78 : f32 to vector<8x96xf32>
    %321 = arith.addf %320, %319 : vector<8x96xf32>
    %322 = arith.divf %320, %321 : vector<8x96xf32>
    %323 = vector.extract_strided_slice %322 {offsets = [0, 0], sizes = [8, 32], strides = [1, 1]} : vector<8x96xf32> to vector<8x32xf32>
    %324 = vector.extract_strided_slice %322 {offsets = [0, 32], sizes = [8, 32], strides = [1, 1]} : vector<8x96xf32> to vector<8x32xf32>
    %325 = vector.extract_strided_slice %322 {offsets = [0, 64], sizes = [8, 32], strides = [1, 1]} : vector<8x96xf32> to vector<8x32xf32>
    %326 = vector.extract_strided_slice %316 {offsets = [0, 96], sizes = [8, 32], strides = [1, 1]} : vector<8x128xf32> to vector<8x32xf32>
    %327 = math.tanh %326 : vector<8x32xf32>
    %328 = arith.mulf %324, %275 : vector<8x32xf32>
    %329 = arith.mulf %323, %327 : vector<8x32xf32>
    %330 = arith.addf %328, %329 : vector<8x32xf32>
    %331 = math.tanh %330 : vector<8x32xf32>
    %332 = arith.mulf %325, %331 : vector<8x32xf32>
    %333 = arith.index_cast %c5_i32 : i32 to index
    %c0_79 = arith.constant 0 : index
    %c0_80 = arith.constant 0 : index
    %334 = vector.load %arg11[%333, %c0_79, %c0_80] : memref<8x8x32xf32, #tpu.memory_space<vmem>>, vector<1x8x32xf32>
    %335 = vector.shape_cast %334 : vector<1x8x32xf32> to vector<8x32xf32>
    %336 = vector.shape_cast %313 : vector<8x32xf32> to vector<1x8x32xf32>
    tpu.vector_store %arg11[%333, %c0_79, %c0_80], %336 {strides = array<i32>} : memref<8x8x32xf32, #tpu.memory_space<vmem>>, vector<1x8x32xf32>,
    %337 = arith.index_cast %286 : i32 to index
    %c0_81 = arith.constant 0 : index
    %c0_82 = arith.constant 0 : index
    %338 = vector.load %arg12[%337, %c0_81, %c0_82] : memref<8x8x32xf32, #tpu.memory_space<vmem>>, vector<1x8x32xf32>
    %339 = vector.shape_cast %338 : vector<1x8x32xf32> to vector<8x32xf32>
    %340 = vector.shape_cast %332 : vector<8x32xf32> to vector<1x8x32xf32>
    tpu.vector_store %arg12[%337, %c0_81, %c0_82], %340 {strides = array<i32>} : memref<8x8x32xf32, #tpu.memory_space<vmem>>, vector<1x8x32xf32>,
    %c6_i32 = arith.constant 6 : i32
    %c7_i32_83 = arith.constant 7 : i32
    %341 = arith.subi %c7_i32_83, %c6_i32 : i32
    %342 = tpu.concatenate %313, %332 in 1 : vector<8x32xf32>, vector<8x32xf32> -> vector<8x64xf32>
    %cst_84 = arith.constant dense<0.000000e+00> : vector<8x256xf32>
    %343 = tpu.matmul %342, %9, %cst_84 {dimension_numbers = #tpu.dot_dimension_numbers<[1], [0], [0], [1], [0, 0, 1, 1], [], []>} : vector<8x64xf32>, vector<64x256xf32>, vector<8x256xf32> -> vector<8x256xf32>
    %344 = arith.index_cast %c6_i32 : i32 to index
    %c0_85 = arith.constant 0 : index
    %c0_86 = arith.constant 0 : index
    %345 = vector.load %arg10[%344, %c0_85, %c0_86] : memref<8x8x256xf32, #tpu.memory_space<vmem>>, vector<1x8x256xf32>
    %346 = vector.shape_cast %345 : vector<1x8x256xf32> to vector<8x256xf32>
    %347 = arith.index_cast %341 : i32 to index
    %c0_87 = arith.constant 0 : index
    %c0_88 = arith.constant 0 : index
    %348 = vector.load %arg10[%347, %c0_87, %c0_88] : memref<8x8x256xf32, #tpu.memory_space<vmem>>, vector<1x8x256xf32>
    %349 = vector.shape_cast %348 : vector<1x8x256xf32> to vector<8x256xf32>
    %350 = vector.extract_strided_slice %346 {offsets = [0, 0], sizes = [8, 128], strides = [1, 1]} : vector<8x256xf32> to vector<8x128xf32>
    %351 = vector.extract_strided_slice %343 {offsets = [0, 0], sizes = [8, 128], strides = [1, 1]} : vector<8x256xf32> to vector<8x128xf32>
    %352 = arith.addf %350, %351 : vector<8x128xf32>
    %353 = vector.extract_strided_slice %352 {offsets = [0, 0], sizes = [8, 96], strides = [1, 1]} : vector<8x128xf32> to vector<8x96xf32>
    %354 = arith.negf %353 : vector<8x96xf32>
    %355 = math.exp %354 : vector<8x96xf32>
    %cst_89 = arith.constant 1.000000e+00 : f32
    %356 = vector.broadcast %cst_89 : f32 to vector<8x96xf32>
    %357 = arith.addf %356, %355 : vector<8x96xf32>
    %358 = arith.divf %356, %357 : vector<8x96xf32>
    %359 = vector.extract_strided_slice %358 {offsets = [0, 0], sizes = [8, 32], strides = [1, 1]} : vector<8x96xf32> to vector<8x32xf32>
    %360 = vector.extract_strided_slice %358 {offsets = [0, 32], sizes = [8, 32], strides = [1, 1]} : vector<8x96xf32> to vector<8x32xf32>
    %361 = vector.extract_strided_slice %358 {offsets = [0, 64], sizes = [8, 32], strides = [1, 1]} : vector<8x96xf32> to vector<8x32xf32>
    %362 = vector.extract_strided_slice %352 {offsets = [0, 96], sizes = [8, 32], strides = [1, 1]} : vector<8x128xf32> to vector<8x32xf32>
    %363 = math.tanh %362 : vector<8x32xf32>
    %364 = arith.mulf %360, %311 : vector<8x32xf32>
    %365 = arith.mulf %359, %363 : vector<8x32xf32>
    %366 = arith.addf %364, %365 : vector<8x32xf32>
    %367 = math.tanh %366 : vector<8x32xf32>
    %368 = arith.mulf %361, %367 : vector<8x32xf32>
    %369 = vector.extract_strided_slice %349 {offsets = [0, 128], sizes = [8, 128], strides = [1, 1]} : vector<8x256xf32> to vector<8x128xf32>
    %370 = vector.extract_strided_slice %343 {offsets = [0, 128], sizes = [8, 128], strides = [1, 1]} : vector<8x256xf32> to vector<8x128xf32>
    %371 = arith.addf %369, %370 : vector<8x128xf32>
    %372 = vector.extract_strided_slice %371 {offsets = [0, 0], sizes = [8, 96], strides = [1, 1]} : vector<8x128xf32> to vector<8x96xf32>
    %373 = arith.negf %372 : vector<8x96xf32>
    %374 = math.exp %373 : vector<8x96xf32>
    %cst_90 = arith.constant 1.000000e+00 : f32
    %375 = vector.broadcast %cst_90 : f32 to vector<8x96xf32>
    %376 = arith.addf %375, %374 : vector<8x96xf32>
    %377 = arith.divf %375, %376 : vector<8x96xf32>
    %378 = vector.extract_strided_slice %377 {offsets = [0, 0], sizes = [8, 32], strides = [1, 1]} : vector<8x96xf32> to vector<8x32xf32>
    %379 = vector.extract_strided_slice %377 {offsets = [0, 32], sizes = [8, 32], strides = [1, 1]} : vector<8x96xf32> to vector<8x32xf32>
    %380 = vector.extract_strided_slice %377 {offsets = [0, 64], sizes = [8, 32], strides = [1, 1]} : vector<8x96xf32> to vector<8x32xf32>
    %381 = vector.extract_strided_slice %371 {offsets = [0, 96], sizes = [8, 32], strides = [1, 1]} : vector<8x128xf32> to vector<8x32xf32>
    %382 = math.tanh %381 : vector<8x32xf32>
    %383 = arith.mulf %379, %330 : vector<8x32xf32>
    %384 = arith.mulf %378, %382 : vector<8x32xf32>
    %385 = arith.addf %383, %384 : vector<8x32xf32>
    %386 = math.tanh %385 : vector<8x32xf32>
    %387 = arith.mulf %380, %386 : vector<8x32xf32>
    %388 = arith.index_cast %c6_i32 : i32 to index
    %c0_91 = arith.constant 0 : index
    %c0_92 = arith.constant 0 : index
    %389 = vector.load %arg11[%388, %c0_91, %c0_92] : memref<8x8x32xf32, #tpu.memory_space<vmem>>, vector<1x8x32xf32>
    %390 = vector.shape_cast %389 : vector<1x8x32xf32> to vector<8x32xf32>
    %391 = vector.shape_cast %368 : vector<8x32xf32> to vector<1x8x32xf32>
    tpu.vector_store %arg11[%388, %c0_91, %c0_92], %391 {strides = array<i32>} : memref<8x8x32xf32, #tpu.memory_space<vmem>>, vector<1x8x32xf32>,
    %392 = arith.index_cast %341 : i32 to index
    %c0_93 = arith.constant 0 : index
    %c0_94 = arith.constant 0 : index
    %393 = vector.load %arg12[%392, %c0_93, %c0_94] : memref<8x8x32xf32, #tpu.memory_space<vmem>>, vector<1x8x32xf32>
    %394 = vector.shape_cast %393 : vector<1x8x32xf32> to vector<8x32xf32>
    %395 = vector.shape_cast %387 : vector<8x32xf32> to vector<1x8x32xf32>
    tpu.vector_store %arg12[%392, %c0_93, %c0_94], %395 {strides = array<i32>} : memref<8x8x32xf32, #tpu.memory_space<vmem>>, vector<1x8x32xf32>,
    %c7_i32_95 = arith.constant 7 : i32
    %c7_i32_96 = arith.constant 7 : i32
    %396 = arith.subi %c7_i32_96, %c7_i32_95 : i32
    %397 = tpu.concatenate %368, %387 in 1 : vector<8x32xf32>, vector<8x32xf32> -> vector<8x64xf32>
    %cst_97 = arith.constant dense<0.000000e+00> : vector<8x256xf32>
    %398 = tpu.matmul %397, %9, %cst_97 {dimension_numbers = #tpu.dot_dimension_numbers<[1], [0], [0], [1], [0, 0, 1, 1], [], []>} : vector<8x64xf32>, vector<64x256xf32>, vector<8x256xf32> -> vector<8x256xf32>
    %399 = arith.index_cast %c7_i32_95 : i32 to index
    %c0_98 = arith.constant 0 : index
    %c0_99 = arith.constant 0 : index
    %400 = vector.load %arg10[%399, %c0_98, %c0_99] : memref<8x8x256xf32, #tpu.memory_space<vmem>>, vector<1x8x256xf32>
    %401 = vector.shape_cast %400 : vector<1x8x256xf32> to vector<8x256xf32>
    %402 = arith.index_cast %396 : i32 to index
    %c0_100 = arith.constant 0 : index
    %c0_101 = arith.constant 0 : index
    %403 = vector.load %arg10[%402, %c0_100, %c0_101] : memref<8x8x256xf32, #tpu.memory_space<vmem>>, vector<1x8x256xf32>
    %404 = vector.shape_cast %403 : vector<1x8x256xf32> to vector<8x256xf32>
    %405 = vector.extract_strided_slice %401 {offsets = [0, 0], sizes = [8, 128], strides = [1, 1]} : vector<8x256xf32> to vector<8x128xf32>
    %406 = vector.extract_strided_slice %398 {offsets = [0, 0], sizes = [8, 128], strides = [1, 1]} : vector<8x256xf32> to vector<8x128xf32>
    %407 = arith.addf %405, %406 : vector<8x128xf32>
    %408 = vector.extract_strided_slice %407 {offsets = [0, 0], sizes = [8, 96], strides = [1, 1]} : vector<8x128xf32> to vector<8x96xf32>
    %409 = arith.negf %408 : vector<8x96xf32>
    %410 = math.exp %409 : vector<8x96xf32>
    %cst_102 = arith.constant 1.000000e+00 : f32
    %411 = vector.broadcast %cst_102 : f32 to vector<8x96xf32>
    %412 = arith.addf %411, %410 : vector<8x96xf32>
    %413 = arith.divf %411, %412 : vector<8x96xf32>
    %414 = vector.extract_strided_slice %413 {offsets = [0, 0], sizes = [8, 32], strides = [1, 1]} : vector<8x96xf32> to vector<8x32xf32>
    %415 = vector.extract_strided_slice %413 {offsets = [0, 32], sizes = [8, 32], strides = [1, 1]} : vector<8x96xf32> to vector<8x32xf32>
    %416 = vector.extract_strided_slice %413 {offsets = [0, 64], sizes = [8, 32], strides = [1, 1]} : vector<8x96xf32> to vector<8x32xf32>
    %417 = vector.extract_strided_slice %407 {offsets = [0, 96], sizes = [8, 32], strides = [1, 1]} : vector<8x128xf32> to vector<8x32xf32>
    %418 = math.tanh %417 : vector<8x32xf32>
    %419 = arith.mulf %415, %366 : vector<8x32xf32>
    %420 = arith.mulf %414, %418 : vector<8x32xf32>
    %421 = arith.addf %419, %420 : vector<8x32xf32>
    %422 = math.tanh %421 : vector<8x32xf32>
    %423 = arith.mulf %416, %422 : vector<8x32xf32>
    %424 = vector.extract_strided_slice %404 {offsets = [0, 128], sizes = [8, 128], strides = [1, 1]} : vector<8x256xf32> to vector<8x128xf32>
    %425 = vector.extract_strided_slice %398 {offsets = [0, 128], sizes = [8, 128], strides = [1, 1]} : vector<8x256xf32> to vector<8x128xf32>
    %426 = arith.addf %424, %425 : vector<8x128xf32>
    %427 = vector.extract_strided_slice %426 {offsets = [0, 0], sizes = [8, 96], strides = [1, 1]} : vector<8x128xf32> to vector<8x96xf32>
    %428 = arith.negf %427 : vector<8x96xf32>
    %429 = math.exp %428 : vector<8x96xf32>
    %cst_103 = arith.constant 1.000000e+00 : f32
    %430 = vector.broadcast %cst_103 : f32 to vector<8x96xf32>
    %431 = arith.addf %430, %429 : vector<8x96xf32>
    %432 = arith.divf %430, %431 : vector<8x96xf32>
    %433 = vector.extract_strided_slice %432 {offsets = [0, 0], sizes = [8, 32], strides = [1, 1]} : vector<8x96xf32> to vector<8x32xf32>
    %434 = vector.extract_strided_slice %432 {offsets = [0, 32], sizes = [8, 32], strides = [1, 1]} : vector<8x96xf32> to vector<8x32xf32>
    %435 = vector.extract_strided_slice %432 {offsets = [0, 64], sizes = [8, 32], strides = [1, 1]} : vector<8x96xf32> to vector<8x32xf32>
    %436 = vector.extract_strided_slice %426 {offsets = [0, 96], sizes = [8, 32], strides = [1, 1]} : vector<8x128xf32> to vector<8x32xf32>
    %437 = math.tanh %436 : vector<8x32xf32>
    %438 = arith.mulf %434, %385 : vector<8x32xf32>
    %439 = arith.mulf %433, %437 : vector<8x32xf32>
    %440 = arith.addf %438, %439 : vector<8x32xf32>
    %441 = math.tanh %440 : vector<8x32xf32>
    %442 = arith.mulf %435, %441 : vector<8x32xf32>
    %443 = arith.index_cast %c7_i32_95 : i32 to index
    %c0_104 = arith.constant 0 : index
    %c0_105 = arith.constant 0 : index
    %444 = vector.load %arg11[%443, %c0_104, %c0_105] : memref<8x8x32xf32, #tpu.memory_space<vmem>>, vector<1x8x32xf32>
    %445 = vector.shape_cast %444 : vector<1x8x32xf32> to vector<8x32xf32>
    %446 = vector.shape_cast %423 : vector<8x32xf32> to vector<1x8x32xf32>
    tpu.vector_store %arg11[%443, %c0_104, %c0_105], %446 {strides = array<i32>} : memref<8x8x32xf32, #tpu.memory_space<vmem>>, vector<1x8x32xf32>,
    %447 = arith.index_cast %396 : i32 to index
    %c0_106 = arith.constant 0 : index
    %c0_107 = arith.constant 0 : index
    %448 = vector.load %arg12[%447, %c0_106, %c0_107] : memref<8x8x32xf32, #tpu.memory_space<vmem>>, vector<1x8x32xf32>
    %449 = vector.shape_cast %448 : vector<1x8x32xf32> to vector<8x32xf32>
    %450 = vector.shape_cast %442 : vector<8x32xf32> to vector<1x8x32xf32>
    tpu.vector_store %arg12[%447, %c0_106, %c0_107], %450 {strides = array<i32>} : memref<8x8x32xf32, #tpu.memory_space<vmem>>, vector<1x8x32xf32>,
    %c8_i32 = arith.constant 8 : i32
    %c0_108 = arith.constant 0 : index
    %c0_109 = arith.constant 0 : index
    %c0_110 = arith.constant 0 : index
    %451 = vector.load %arg11[%c0_108, %c0_109, %c0_110] : memref<8x8x32xf32, #tpu.memory_space<vmem>>, vector<8x8x32xf32>
    %c0_111 = arith.constant 0 : index
    %c0_112 = arith.constant 0 : index
    %c0_113 = arith.constant 0 : index
    %452 = vector.load %arg12[%c0_111, %c0_112, %c0_113] : memref<8x8x32xf32, #tpu.memory_space<vmem>>, vector<8x8x32xf32>
    %453 = tpu.concatenate %451, %452 in 2 : vector<8x8x32xf32>, vector<8x8x32xf32> -> vector<8x8x64xf32>
    %cst_114 = arith.constant 0.000000e+00 : f32
    %454 = vector.broadcast %cst_114 : f32 to vector<8x8x64xf32>
    %455 = arith.maximumf %453, %454 : vector<8x8x64xf32>
    %456 = vector.shape_cast %455 : vector<8x8x64xf32> to vector<64x64xf32>
    %c0_115 = arith.constant 0 : index
    %c0_116 = arith.constant 0 : index
    %457 = vector.load %arg5[%c0_115, %c0_116] : memref<64x128xf32, #tpu.memory_space<vmem>>, vector<64x128xf32>
    %cst_117 = arith.constant dense<0.000000e+00> : vector<64x128xf32>
    %458 = tpu.matmul %456, %457, %cst_117 {dimension_numbers = #tpu.dot_dimension_numbers<[1], [0], [0], [1], [0, 0, 1, 1], [], []>} : vector<64x64xf32>, vector<64x128xf32>, vector<64x128xf32> -> vector<64x128xf32>
    %c0_118 = arith.constant 0 : index
    %c0_119 = arith.constant 0 : index
    %459 = vector.load %arg6[%c0_118, %c0_119] : memref<1x128xf32, #tpu.memory_space<vmem>>, vector<1x128xf32>
    %460 = vector.broadcast %459 : vector<1x128xf32> to vector<64x128xf32>
    %461 = arith.addf %458, %460 : vector<64x128xf32>
    %462 = vector.shape_cast %461 : vector<64x128xf32> to vector<8x8x128xf32>
    %c0_120 = arith.constant 0 : index
    %c0_121 = arith.constant 0 : index
    %c0_122 = arith.constant 0 : index
    %463 = vector.load %arg1[%c0_120, %c0_121, %c0_122] : memref<8x8x128xf32, #tpu.memory_space<vmem>>, vector<8x8x128xf32>
    %464 = arith.addf %462, %463 : vector<8x8x128xf32>
    %465 = tpu.iota {dimensions = array<i32: 2>} : vector<1x1x128xi32>
    %c16_i32 = arith.constant 16 : i32
    %466 = vector.broadcast %c16_i32 : i32 to vector<1x1x128xi32>
    %467 = arith.cmpi slt, %465, %466 : vector<1x1x128xi32>
    %468 = arith.extui %467 : vector<1x1x128xi1> to vector<1x1x128xi32>
    %469 = arith.sitofp %468 : vector<1x1x128xi32> to vector<1x1x128xf32>
    %470 = vector.broadcast %469 : vector<1x1x128xf32> to vector<8x8x128xf32>
    %471 = arith.mulf %464, %470 : vector<8x8x128xf32>
    %cst_123 = arith.constant dense<0.000000e+00> : vector<8xf32>
    %472 = vector.multi_reduction <add>, %471, %cst_123 [0, 2] : vector<8x8x128xf32> to vector<8xf32>
    %473 = vector.shape_cast %472 : vector<8xf32> to vector<1x8x1xf32>
    %cst_124 = arith.constant 1.280000e+02 : f32
    %474 = vector.broadcast %cst_124 : f32 to vector<1x8x1xf32>
    %475 = arith.divf %473, %474 : vector<1x8x1xf32>
    %476 = vector.broadcast %475 : vector<1x8x1xf32> to vector<8x8x128xf32>
    %477 = arith.subf %464, %476 : vector<8x8x128xf32>
    %478 = vector.broadcast %469 : vector<1x1x128xf32> to vector<8x8x128xf32>
    %479 = arith.mulf %477, %478 : vector<8x8x128xf32>
    %480 = arith.mulf %479, %479 : vector<8x8x128xf32>
    %cst_125 = arith.constant dense<0.000000e+00> : vector<8xf32>
    %481 = vector.multi_reduction <add>, %480, %cst_125 [0, 2] : vector<8x8x128xf32> to vector<8xf32>
    %482 = vector.shape_cast %481 : vector<8xf32> to vector<1x8x1xf32>
    %cst_126 = arith.constant 1.280000e+02 : f32
    %483 = vector.broadcast %cst_126 : f32 to vector<1x8x1xf32>
    %484 = arith.divf %482, %483 : vector<1x8x1xf32>
    %485 = vector.broadcast %475 : vector<1x8x1xf32> to vector<8x8x128xf32>
    %486 = arith.subf %464, %485 : vector<8x8x128xf32>
    %cst_127 = arith.constant 9.99999996E-13 : f32
    %487 = vector.broadcast %cst_127 : f32 to vector<1x8x1xf32>
    %488 = arith.addf %484, %487 : vector<1x8x1xf32>
    %489 = math.rsqrt %488 : vector<1x8x1xf32>
    %490 = vector.broadcast %489 : vector<1x8x1xf32> to vector<8x8x128xf32>
    %491 = arith.mulf %486, %490 : vector<8x8x128xf32>
    %c0_128 = arith.constant 0 : index
    %c0_129 = arith.constant 0 : index
    %492 = vector.load %arg7[%c0_128, %c0_129] : memref<1x128xf32, #tpu.memory_space<vmem>>, vector<1x128xf32>
    %493 = vector.shape_cast %492 : vector<1x128xf32> to vector<1x1x128xf32>
    %494 = vector.broadcast %493 : vector<1x1x128xf32> to vector<8x8x128xf32>
    %495 = arith.mulf %491, %494 : vector<8x8x128xf32>
    %c0_130 = arith.constant 0 : index
    %c0_131 = arith.constant 0 : index
    %496 = vector.load %arg8[%c0_130, %c0_131] : memref<1x128xf32, #tpu.memory_space<vmem>>, vector<1x128xf32>
    %497 = vector.shape_cast %496 : vector<1x128xf32> to vector<1x1x128xf32>
    %498 = vector.broadcast %497 : vector<1x1x128xf32> to vector<8x8x128xf32>
    %499 = arith.addf %495, %498 : vector<8x8x128xf32>
    %c0_132 = arith.constant 0 : index
    %c0_133 = arith.constant 0 : index
    %c0_134 = arith.constant 0 : index
    %500 = vector.load %arg9[%c0_132, %c0_133, %c0_134] : memref<8x8x128xf32, #tpu.memory_space<vmem>>, vector<8x8x128xf32>
    tpu.vector_store %arg9[%c0_132, %c0_133, %c0_134], %499 {strides = array<i32>} : memref<8x8x128xf32, #tpu.memory_space<vmem>>, vector<8x8x128xf32>,
    return
  }
  func.func @transform_0(%arg0: i32) -> (i32, i32, i32) {
    %c0_i32 = arith.constant 0 : i32
    %c0_i32_0 = arith.constant 0 : i32
    %c0_i32_1 = arith.constant 0 : i32
    return %c0_i32, %arg0, %c0_i32_0 : i32, i32, i32
  }
  func.func @transform_1(%arg0: i32) -> (i32, i32) {
    %c0_i32 = arith.constant 0 : i32
    %c0_i32_0 = arith.constant 0 : i32
    %c0_i32_1 = arith.constant 0 : i32
    return %c0_i32, %c0_i32_0 : i32, i32
  }
  func.func @transform_2(%arg0: i32) -> (i32, i32) {
    %c0_i32 = arith.constant 0 : i32
    %c0_i32_0 = arith.constant 0 : i32
    %c0_i32_1 = arith.constant 0 : i32
    return %c0_i32, %c0_i32_0 : i32, i32
  }
  func.func @transform_3(%arg0: i32) -> (i32, i32) {
    %c0_i32 = arith.constant 0 : i32
    %c0_i32_0 = arith.constant 0 : i32
    %c0_i32_1 = arith.constant 0 : i32
    return %c0_i32, %c0_i32_0 : i32, i32
  }
  func.func @transform_4(%arg0: i32) -> (i32, i32) {
    %c0_i32 = arith.constant 0 : i32
    %c0_i32_0 = arith.constant 0 : i32
    %c0_i32_1 = arith.constant 0 : i32
    return %c0_i32, %c0_i32_0 : i32, i32
  }
  func.func @transform_5(%arg0: i32) -> (i32, i32) {
    %c0_i32 = arith.constant 0 : i32
    %c0_i32_0 = arith.constant 0 : i32
    %c0_i32_1 = arith.constant 0 : i32
    return %c0_i32, %c0_i32_0 : i32, i32
  }
  func.func @transform_6(%arg0: i32) -> (i32, i32) {
    %c0_i32 = arith.constant 0 : i32
    %c0_i32_0 = arith.constant 0 : i32
    %c0_i32_1 = arith.constant 0 : i32
    return %c0_i32, %c0_i32_0 : i32, i32
  }
  func.func @transform_7(%arg0: i32) -> (i32, i32) {
    %c0_i32 = arith.constant 0 : i32
    %c0_i32_0 = arith.constant 0 : i32
    %c0_i32_1 = arith.constant 0 : i32
    return %c0_i32, %c0_i32_0 : i32, i32
  }
  func.func @transform_8(%arg0: i32) -> (i32, i32, i32) {
    %c0_i32 = arith.constant 0 : i32
    %c0_i32_0 = arith.constant 0 : i32
    %c0_i32_1 = arith.constant 0 : i32
    return %c0_i32, %arg0, %c0_i32_0 : i32, i32, i32
  }
}

</mosaic_0001>

<llo_original>
// kernel: tpu_custom_call.1
$region0: #{tpu_custom_call.1}
  #allocation0 [shape = 'u32[]', space=smem, size = 0x4, offset = 0x4, fixed_abs, tag = 'smem constant byte address 0x4 - core index']
  #allocation1 [shape = 'u32[144,128]{1,0:T(1,128)}', space=vmem, size = 0x12000, scoped, tag = 'internal scratch']
  #allocation2 [shape = 'f32[8,8,256]{2,1,0:T(8,128)}', space=vmem, size = 0x10000, scoped, tag = 'scratch operand']
  #allocation3 [shape = 'f32[8,8,32]{2,1,0:T(8,128)}', space=vmem, size = 0x8000, scoped, tag = 'scratch operand']
  #allocation4 [shape = 'f32[8,8,32]{2,1,0:T(8,128)}', space=vmem, size = 0x8000, scoped, tag = 'scratch operand']
  %s0 = inlined_call_operand.hbm [shape: f32[8,8,128], index: 0, kind: input, shape index: {}]
  %s1 = inlined_call_operand.hbm [shape: f32[128,256], index: 1, kind: input, shape index: {}]
  %s2 = inlined_call_operand.hbm [shape: f32[64,256], index: 2, kind: input, shape index: {}]
  %s3 = inlined_call_operand.vmem [shape: f32[1,256], index: 3, kind: input, shape index: {}]
  %s4 = inlined_call_operand.hbm [shape: f32[64,128], index: 4, kind: input, shape index: {}]
  %s5 = inlined_call_operand.vmem [shape: f32[1,128], index: 5, kind: input, shape index: {}]
  %s6 = inlined_call_operand.vmem [shape: f32[1,128], index: 6, kind: input, shape index: {}]
  %s7 = inlined_call_operand.vmem [shape: f32[1,128], index: 7, kind: input, shape index: {}]
  %s8 = inlined_call_operand.hbm [shape: f32[8,8,128], index: 8, kind: output, shape index: {}]
  %s9 = sld [smem:[#allocation0]]
  $region58: #{tpu_custom_call.1} parent=0
    _
  %s11 = ssub.s32 1, %s9
  %s12 = scalar_select 0, %s11, %s9
  $region1: #{tpu_custom_call.1} parent=0
    #allocation5 [shape = 'u8[32768]{0}', space=vmem, size = 0x8000, scoped, tag = 'input window, operand 0, single buffered']
    #allocation6 [shape = 's32[1]{0}', space=sflag, size = 0x4, scoped, tag = 'scoped memory for tpu_custom_call.1']
    #allocation7 [shape = 's32[1]{0}', space=sflag, size = 0x4, scoped, tag = 'scoped memory for tpu_custom_call.1']
    #allocation8 [shape = 'u8[131072]{0}', space=vmem, size = 0x20000, scoped, tag = 'input window, operand 1, single buffered']
    #allocation9 [shape = 's32[1]{0}', space=sflag, size = 0x4, scoped, tag = 'scoped memory for tpu_custom_call.1']
    #allocation10 [shape = 'u8[65536]{0}', space=vmem, size = 0x10000, scoped, tag = 'input window, operand 2, single buffered']
    #allocation11 [shape = 'u8[32768]{0}', space=vmem, size = 0x8000, scoped, tag = 'input window, operand 4, single buffered']
    #allocation12 [shape = 's32[1]{0}', space=sflag, size = 0x4, scoped, tag = 'scoped memory for tpu_custom_call.1']
    #allocation13 [shape = 'u8[32768]{0}', space=vmem, size = 0x8000, scoped, tag = 'output window, operand 0, single buffered']
    %13 = vsyncpa [#allocation6], 0
    %14 = vsyncpa [#allocation9], 0
    %15 = vsyncpa [#allocation12], 0
    %16 = vsyncpa [#allocation7], 0
    // Predicated region
    $region2: #{tpu_custom_call.1} parent=1 // pred_check
      _
    $region3: #{tpu_custom_call.1} parent=1 // pred_check_branch
      %18 = sbr.rel (0) target = $region5
    $region4: #{tpu_custom_call.1} parent=1 // pred_region
      %s20 = ssub.s32 1024, 1024
      %21 = vsyncadd [#allocation6], %s20
      %s22 = sshll.u32 [#allocation5], 4
      %s23 = int_to_ptr.vmem [resolvable:$true] %s22
      %28 = dma.hbm_to_vmem [thread:$0]  %s0, 1024, %s23, [#allocation6], 128, 128, 8
    $region5: #{tpu_custom_call.1} parent=1 // pred_fallthru
      _
    // Predicated region
    $region6: #{tpu_custom_call.1} parent=1 // pred_check
      _
    $region7: #{tpu_custom_call.1} parent=1 // pred_check_branch
      %30 = sbr.rel (0) target = $region9
    $region8: #{tpu_custom_call.1} parent=1 // pred_region
      %s32 = ssub.s32 4096, 4096
      %33 = vsyncadd [#allocation9], %s32
      %s34 = sshll.u32 [#allocation8], 4
      %s35 = int_to_ptr.vmem [resolvable:$true] %s34
      %40 = dma.hbm_to_vmem [thread:$0]  %s1, 4096, %s35, [#allocation9], 256, 256, 16
    $region9: #{tpu_custom_call.1} parent=1 // pred_fallthru
      _
    // Predicated region
    $region10: #{tpu_custom_call.1} parent=1 // pred_check
      _
    $region11: #{tpu_custom_call.1} parent=1 // pred_check_branch
      %42 = sbr.rel (0) target = $region13
    $region12: #{tpu_custom_call.1} parent=1 // pred_region
      %s44 = ssub.s32 2048, 2048
      %45 = vsyncadd [#allocation9], %s44
      %s46 = sshll.u32 [#allocation10], 4
      %s47 = int_to_ptr.vmem [resolvable:$true] %s46
      %52 = dma.hbm_to_vmem [thread:$0]  %s2, 2048, %s47, [#allocation9], 256, 256, 16
    $region13: #{tpu_custom_call.1} parent=1 // pred_fallthru
      _
    // Predicated region
    $region14: #{tpu_custom_call.1} parent=1 // pred_check
      _
    $region15: #{tpu_custom_call.1} parent=1 // pred_check_branch
      %54 = sbr.rel (0) target = $region17
    $region16: #{tpu_custom_call.1} parent=1 // pred_region
      _
    $region17: #{tpu_custom_call.1} parent=1 // pred_fallthru
      _
    // Predicated region
    $region18: #{tpu_custom_call.1} parent=1 // pred_check
      _
    $region19: #{tpu_custom_call.1} parent=1 // pred_check_branch
      %56 = sbr.rel (0) target = $region21
    $region20: #{tpu_custom_call.1} parent=1 // pred_region
      %s58 = ssub.s32 1024, 1024
      %59 = vsyncadd [#allocation12], %s58
      %s60 = sshll.u32 [#allocation11], 4
      %s61 = int_to_ptr.vmem [resolvable:$true] %s60
      %66 = dma.hbm_to_vmem [thread:$0]  %s4, 1024, %s61, [#allocation12], 128, 128, 8
    $region21: #{tpu_custom_call.1} parent=1 // pred_fallthru
      _
    // Predicated region
    $region22: #{tpu_custom_call.1} parent=1 // pred_check
      _
    $region23: #{tpu_custom_call.1} parent=1 // pred_check_branch
      %68 = sbr.rel (0) target = $region25
    $region24: #{tpu_custom_call.1} parent=1 // pred_region
      _
    $region25: #{tpu_custom_call.1} parent=1 // pred_fallthru
      _
    // Predicated region
    $region26: #{tpu_custom_call.1} parent=1 // pred_check
      _
    $region27: #{tpu_custom_call.1} parent=1 // pred_check_branch
      %70 = sbr.rel (0) target = $region29
    $region28: #{tpu_custom_call.1} parent=1 // pred_region
      _
    $region29: #{tpu_custom_call.1} parent=1 // pred_fallthru
      _
    // Predicated region
    $region30: #{tpu_custom_call.1} parent=1 // pred_check
      _
    $region31: #{tpu_custom_call.1} parent=1 // pred_check_branch
      %72 = sbr.rel (0) target = $region33
    $region32: #{tpu_custom_call.1} parent=1 // pred_region
      _
    $region33: #{tpu_custom_call.1} parent=1 // pred_fallthru
      _
    // Predicated region
    $region34: #{tpu_custom_call.1} parent=1 // pred_check
      _
    $region35: #{tpu_custom_call.1} parent=1 // pred_check_branch
      %74 = sbr.rel (0) target = $region37
    $region36: #{tpu_custom_call.1} parent=1 // pred_region
      %75 = dma.done [#allocation6], 1024
    $region37: #{tpu_custom_call.1} parent=1 // pred_fallthru
      _
    // Predicated region
    $region38: #{tpu_custom_call.1} parent=1 // pred_check
      _
    $region39: #{tpu_custom_call.1} parent=1 // pred_check_branch
      %77 = sbr.rel (0) target = $region41
    $region40: #{tpu_custom_call.1} parent=1 // pred_region
      %78 = dma.done [#allocation9], 4096
    $region41: #{tpu_custom_call.1} parent=1 // pred_fallthru
      _
    // Predicated region
    $region42: #{tpu_custom_call.1} parent=1 // pred_check
      _
    $region43: #{tpu_custom_call.1} parent=1 // pred_check_branch
      %80 = sbr.rel (0) target = $region45
    $region44: #{tpu_custom_call.1} parent=1 // pred_region
      %81 = dma.done [#allocation9], 2048
    $region45: #{tpu_custom_call.1} parent=1 // pred_fallthru
      _
    // Predicated region
    $region46: #{tpu_custom_call.1} parent=1 // pred_check
      _
    $region47: #{tpu_custom_call.1} parent=1 // pred_check_branch
      %83 = sbr.rel (0) target = $region49
    $region48: #{tpu_custom_call.1} parent=1 // pred_region
      %84 = dma.done [#allocation12], 1024
    $region49: #{tpu_custom_call.1} parent=1 // pred_fallthru
      _
    %v85 = vld [vmem:[#allocation5] sm:$0xff]
    %v86 = vld [vmem:[#allocation5 + $0x8] sm:$0xff]
    %v87 = vld [vmem:[#allocation5 + $0x10] sm:$0xff]
    %v88 = vld [vmem:[#allocation5 + $0x18] sm:$0xff]
    %v89 = vld [vmem:[#allocation5 + $0x20] sm:$0xff]
    %v90 = vld [vmem:[#allocation5 + $0x28] sm:$0xff]
    %v91 = vld [vmem:[#allocation5 + $0x30] sm:$0xff]
    %v92 = vld [vmem:[#allocation5 + $0x38] sm:$0xff]
    %v93 = vld [vmem:[#allocation8] sm:$0xff]
    %v94 = vld [vmem:[#allocation8 + $0x8] sm:$0xff]
    %v95 = vld [vmem:[#allocation8 + $0x10] sm:$0xff]
    %v96 = vld [vmem:[#allocation8 + $0x18] sm:$0xff]
    %v97 = vld [vmem:[#allocation8 + $0x20] sm:$0xff]
    %v98 = vld [vmem:[#allocation8 + $0x28] sm:$0xff]
    %v99 = vld [vmem:[#allocation8 + $0x30] sm:$0xff]
    %v100 = vld [vmem:[#allocation8 + $0x38] sm:$0xff]
    %v101 = vld [vmem:[#allocation8 + $0x40] sm:$0xff]
    %v102 = vld [vmem:[#allocation8 + $0x48] sm:$0xff]
    %v103 = vld [vmem:[#allocation8 + $0x50] sm:$0xff]
    %v104 = vld [vmem:[#allocation8 + $0x58] sm:$0xff]
    %v105 = vld [vmem:[#allocation8 + $0x60] sm:$0xff]
    %v106 = vld [vmem:[#allocation8 + $0x68] sm:$0xff]
    %v107 = vld [vmem:[#allocation8 + $0x70] sm:$0xff]
    %v108 = vld [vmem:[#allocation8 + $0x78] sm:$0xff]
    %v109 = vld [vmem:[#allocation8 + $0x80] sm:$0xff]
    %v110 = vld [vmem:[#allocation8 + $0x88] sm:$0xff]
    %v111 = vld [vmem:[#allocation8 + $0x90] sm:$0xff]
    %v112 = vld [vmem:[#allocation8 + $0x98] sm:$0xff]
    %v113 = vld [vmem:[#allocation8 + $0xa0] sm:$0xff]
    %v114 = vld [vmem:[#allocation8 + $0xa8] sm:$0xff]
    %v115 = vld [vmem:[#allocation8 + $0xb0] sm:$0xff]
    %v116 = vld [vmem:[#allocation8 + $0xb8] sm:$0xff]
    %v117 = vld [vmem:[#allocation8 + $0xc0] sm:$0xff]
    %v118 = vld [vmem:[#allocation8 + $0xc8] sm:$0xff]
    %v119 = vld [vmem:[#allocation8 + $0xd0] sm:$0xff]
    %v120 = vld [vmem:[#allocation8 + $0xd8] sm:$0xff]
    %v121 = vld [vmem:[#allocation8 + $0xe0] sm:$0xff]
    %v122 = vld [vmem:[#allocation8 + $0xe8] sm:$0xff]
    %v123 = vld [vmem:[#allocation8 + $0xf0] sm:$0xff]
    %v124 = vld [vmem:[#allocation8 + $0xf8] sm:$0xff]
    %v125 = vld [vmem:[%s3] sm:$0x3]
    %v127 = vlaneseq
    %v128 = vshrl.u32 %v127, 7
    %v129 = vsub.s32 0, %v128
    %v130 = vrot.slane %v125, %v129
    %v131 = vlaneseq
    %v132 = vshrl.u32 %v131, 7
    %v133 = vsub.s32 1, %v132
    %v134 = vrot.slane %v125, %v133
    %137 = vmatprep.subr.mxu0 %v124
    %138 = vmatpush1.msra.mxu0 %v123
    %139 = vmatprep.subr.mxu0 %v122
    %140 = vmatpush1.msra.mxu0 %v121
    %141 = vmatprep.subr.mxu0 %v120
    %142 = vmatpush1.msra.mxu0 %v119
    %143 = vmatprep.subr.mxu0 %v118
    %144 = vmatpush1.msra.mxu0 %v117
    %145 = vmatprep.subr.mxu0 %v116
    %146 = vmatpush1.msra.mxu0 %v115
    %147 = vmatprep.subr.mxu0 %v114
    %148 = vmatpush1.msra.mxu0 %v113
    %149 = vmatprep.subr.mxu0 %v112
    %150 = vmatpush1.msra.mxu0 %v111
    %151 = vmatprep.subr.mxu0 %v110
    %152 = vmatpush1.msra.mxu0 %v109
    %153 = vmatprep.subr.mxu0 %v108
    %154 = vmatpush1.msra.mxu0 %v107
    %155 = vmatprep.subr.mxu0 %v106
    %156 = vmatpush1.msra.mxu0 %v105
    %157 = vmatprep.subr.mxu0 %v104
    %158 = vmatpush1.msra.mxu0 %v103
    %159 = vmatprep.subr.mxu0 %v102
    %160 = vmatpush1.msra.mxu0 %v101
    %161 = vmatprep.subr.mxu0 %v100
    %162 = vmatpush1.msra.mxu0 %v99
    %163 = vmatprep.subr.mxu0 %v98
    %164 = vmatpush1.msra.mxu0 %v97
    %165 = vmatprep.subr.mxu0 %v96
    %166 = vmatpush1.msra.mxu0 %v95
    %167 = vmatprep.subr.mxu0 %v94
    %168 = vmatpush1.msra.mxu0 %v93
    %169 = vmatprep.subr.mxu0 0.0
    %170 = vmatpush2.msra.mxu0 0.0
    %171 = vmatprep.subr.mxu0 0.0
    %172 = vmatpush2.msra.mxu0 0.0
    %173 = vmatprep.subr.mxu0 0.0
    %174 = vmatpush2.msra.mxu0 0.0
    %175 = vmatprep.subr.mxu0 0.0
    %176 = vmatpush2.msra.mxu0 0.0
    %177 = vmatprep.subr.mxu0 0.0
    %178 = vmatpush2.msra.mxu0 0.0
    %179 = vmatprep.subr.mxu0 0.0
    %180 = vmatpush2.msra.mxu0 0.0
    %181 = vmatprep.subr.mxu0 0.0
    %182 = vmatpush2.msra.mxu0 0.0
    %183 = vmatprep.subr.mxu0 0.0
    %184 = vmatpush2.msra.mxu0 0.0
    %185 = vmatprep.subr.mxu0 0.0
    %186 = vmatpush2.msra.mxu0 0.0
    %187 = vmatprep.subr.mxu0 0.0
    %188 = vmatpush2.msra.mxu0 0.0
    %189 = vmatprep.subr.mxu0 0.0
    %190 = vmatpush2.msra.mxu0 0.0
    %191 = vmatprep.subr.mxu0 0.0
    %192 = vmatpush2.msra.mxu0 0.0
    %193 = vmatprep.subr.mxu0 0.0
    %194 = vmatpush2.msra.mxu0 0.0
    %195 = vmatprep.subr.mxu0 0.0
    %196 = vmatpush2.msra.mxu0 0.0
    %197 = vmatprep.subr.mxu0 0.0
    %198 = vmatpush2.msra.mxu0 0.0
    %199 = vmatprep.subr.mxu0 0.0
    %200 = vmatpush2.msra.mxu0 0.0
    %201 = vmatprep.mubr.f32.mxu0 0.0
    %202 = vmatmul.mubr.f32.gmra.mxu0 %v85
    %v203 = vpop.f32.mrf.mxu0
    %v204 = vadd.f32 %v130, %v203
    %v205 = vpop.f32.mrf.mxu0
    %v206 = vadd.f32 %v134, %v205
    %207 = vmatprep.mubr.f32.mxu0 0.0
    %208 = vmatmul.mubr.f32.gmra.mxu0 %v86
    %v209 = vpop.f32.mrf.mxu0
    %v210 = vadd.f32 %v130, %v209
    %v211 = vpop.f32.mrf.mxu0
    %v212 = vadd.f32 %v134, %v211
    %213 = vmatprep.mubr.f32.mxu0 0.0
    %214 = vmatmul.mubr.f32.gmra.mxu0 %v87
    %v215 = vpop.f32.mrf.mxu0
    %v216 = vadd.f32 %v130, %v215
    %v217 = vpop.f32.mrf.mxu0
    %v218 = vadd.f32 %v134, %v217
    %219 = vmatprep.mubr.f32.mxu0 0.0
    %220 = vmatmul.mubr.f32.gmra.mxu0 %v88
    %v221 = vpop.f32.mrf.mxu0
    %v222 = vadd.f32 %v130, %v221
    %v223 = vpop.f32.mrf.mxu0
    %v224 = vadd.f32 %v134, %v223
    %225 = vmatprep.mubr.f32.mxu0 0.0
    %226 = vmatmul.mubr.f32.gmra.mxu0 %v89
    %v227 = vpop.f32.mrf.mxu0
    %v228 = vadd.f32 %v130, %v227
    %v229 = vpop.f32.mrf.mxu0
    %v230 = vadd.f32 %v134, %v229
    %231 = vmatprep.mubr.f32.mxu0 0.0
    %232 = vmatmul.mubr.f32.gmra.mxu0 %v90
    %v233 = vpop.f32.mrf.mxu0
    %v234 = vadd.f32 %v130, %v233
    %v235 = vpop.f32.mrf.mxu0
    %v236 = vadd.f32 %v134, %v235
    %237 = vmatprep.mubr.f32.mxu0 0.0
    %238 = vmatmul.mubr.f32.gmra.mxu0 %v91
    %v239 = vpop.f32.mrf.mxu0
    %v240 = vadd.f32 %v130, %v239
    %v241 = vpop.f32.mrf.mxu0
    %v242 = vadd.f32 %v134, %v241
    %243 = vmatprep.mubr.f32.mxu0 0.0
    %244 = vmatmul.mubr.f32.gmra.mxu0 %v92
    %v245 = vpop.f32.mrf.mxu0
    %v246 = vadd.f32 %v130, %v245
    %v247 = vpop.f32.mrf.mxu0
    %v248 = vadd.f32 %v134, %v247
    %249 = vdwg.mxu0
    %250 = vst [vmem:[#allocation2] sm:$0xff] %v204
    %251 = vst [vmem:[#allocation2 + $0x8] sm:$0xff] %v206
    %252 = vst [vmem:[#allocation2 + $0x10] sm:$0xff] %v210
    %253 = vst [vmem:[#allocation2 + $0x18] sm:$0xff] %v212
    %254 = vst [vmem:[#allocation2 + $0x20] sm:$0xff] %v216
    %255 = vst [vmem:[#allocation2 + $0x28] sm:$0xff] %v218
    %256 = vst [vmem:[#allocation2 + $0x30] sm:$0xff] %v222
    %257 = vst [vmem:[#allocation2 + $0x38] sm:$0xff] %v224
    %258 = vst [vmem:[#allocation2 + $0x40] sm:$0xff] %v228
    %259 = vst [vmem:[#allocation2 + $0x48] sm:$0xff] %v230
    %260 = vst [vmem:[#allocation2 + $0x50] sm:$0xff] %v234
    %261 = vst [vmem:[#allocation2 + $0x58] sm:$0xff] %v236
    %262 = vst [vmem:[#allocation2 + $0x60] sm:$0xff] %v240
    %263 = vst [vmem:[#allocation2 + $0x68] sm:$0xff] %v242
    %264 = vst [vmem:[#allocation2 + $0x70] sm:$0xff] %v246
    %265 = vst [vmem:[#allocation2 + $0x78] sm:$0xff] %v248
    %v266 = vld [vmem:[#allocation10] sm:$0xff]
    %v267 = vld [vmem:[#allocation10 + $0x8] sm:$0xff]
    %v268 = vld [vmem:[#allocation10 + $0x10] sm:$0xff]
    %v269 = vld [vmem:[#allocation10 + $0x18] sm:$0xff]
    %v270 = vld [vmem:[#allocation10 + $0x20] sm:$0xff]
    %v271 = vld [vmem:[#allocation10 + $0x28] sm:$0xff]
    %v272 = vld [vmem:[#allocation10 + $0x30] sm:$0xff]
    %v273 = vld [vmem:[#allocation10 + $0x38] sm:$0xff]
    %v274 = vld [vmem:[#allocation10 + $0x40] sm:$0xff]
    %v275 = vld [vmem:[#allocation10 + $0x48] sm:$0xff]
    %v276 = vld [vmem:[#allocation10 + $0x50] sm:$0xff]
    %v277 = vld [vmem:[#allocation10 + $0x58] sm:$0xff]
    %v278 = vld [vmem:[#allocation10 + $0x60] sm:$0xff]
    %v279 = vld [vmem:[#allocation10 + $0x68] sm:$0xff]
    %v280 = vld [vmem:[#allocation10 + $0x70] sm:$0xff]
    %v281 = vld [vmem:[#allocation10 + $0x78] sm:$0xff]
    %vm282 = vcmask 523264
    %v284 = vsel %vm282, 0.0, 0
    %286 = vmatprep.subr.mxu0 0.0
    %287 = vmatpush1.msra.mxu0 0.0
    %288 = vmatprep.subr.mxu0 0.0
    %289 = vmatpush1.msra.mxu0 0.0
    %290 = vmatprep.subr.mxu0 0.0
    %291 = vmatpush1.msra.mxu0 0.0
    %292 = vmatprep.subr.mxu0 0.0
    %293 = vmatpush1.msra.mxu0 0.0
    %294 = vmatprep.subr.mxu0 0.0
    %295 = vmatpush1.msra.mxu0 0.0
    %296 = vmatprep.subr.mxu0 0.0
    %297 = vmatpush1.msra.mxu0 0.0
    %298 = vmatprep.subr.mxu0 0.0
    %299 = vmatpush1.msra.mxu0 0.0
    %300 = vmatprep.subr.mxu0 0.0
    %301 = vmatpush1.msra.mxu0 0.0
    %302 = vmatprep.subr.mxu0 %v281
    %303 = vmatpush1.msra.mxu0 %v280
    %304 = vmatprep.subr.mxu0 %v279
    %305 = vmatpush1.msra.mxu0 %v278
    %306 = vmatprep.subr.mxu0 %v277
    %307 = vmatpush1.msra.mxu0 %v276
    %308 = vmatprep.subr.mxu0 %v275
    %309 = vmatpush1.msra.mxu0 %v274
    %310 = vmatprep.subr.mxu0 %v273
    %311 = vmatpush1.msra.mxu0 %v272
    %312 = vmatprep.subr.mxu0 %v271
    %313 = vmatpush1.msra.mxu0 %v270
    %314 = vmatprep.subr.mxu0 %v269
    %315 = vmatpush1.msra.mxu0 %v268
    %316 = vmatprep.subr.mxu0 %v267
    %317 = vmatpush1.msra.mxu0 %v266
    %318 = vmatprep.subr.mxu0 0.0
    %319 = vmatpush2.msra.mxu0 0.0
    %320 = vmatprep.subr.mxu0 0.0
    %321 = vmatpush2.msra.mxu0 0.0
    %322 = vmatprep.subr.mxu0 0.0
    %323 = vmatpush2.msra.mxu0 0.0
    %324 = vmatprep.subr.mxu0 0.0
    %325 = vmatpush2.msra.mxu0 0.0
    %326 = vmatprep.subr.mxu0 0.0
    %327 = vmatpush2.msra.mxu0 0.0
    %328 = vmatprep.subr.mxu0 0.0
    %329 = vmatpush2.msra.mxu0 0.0
    %330 = vmatprep.subr.mxu0 0.0
    %331 = vmatpush2.msra.mxu0 0.0
    %332 = vmatprep.subr.mxu0 0.0
    %333 = vmatpush2.msra.mxu0 0.0
    %334 = vmatprep.subr.mxu0 0.0
    %335 = vmatpush2.msra.mxu0 0.0
    %336 = vmatprep.subr.mxu0 0.0
    %337 = vmatpush2.msra.mxu0 0.0
    %338 = vmatprep.subr.mxu0 0.0
    %339 = vmatpush2.msra.mxu0 0.0
    %340 = vmatprep.subr.mxu0 0.0
    %341 = vmatpush2.msra.mxu0 0.0
    %342 = vmatprep.subr.mxu0 0.0
    %343 = vmatpush2.msra.mxu0 0.0
    %344 = vmatprep.subr.mxu0 0.0
    %345 = vmatpush2.msra.mxu0 0.0
    %346 = vmatprep.subr.mxu0 0.0
    %347 = vmatpush2.msra.mxu0 0.0
    %348 = vmatprep.subr.mxu0 0.0
    %349 = vmatpush2.msra.mxu0 0.0
    %350 = vmatprep.mubr.f32.mxu0 0.0
    %351 = vmatmul.mubr.f32.gmra.mxu0 %v284
    %v352 = vpop.f32.mrf.mxu0
    %v353 = vadd.f32 0.0, %v352
    %v354 = vpop.f32.mrf.mxu0
    %v355 = vadd.f32 0.0, %v354
    %356 = vdwg.mxu0
    %v357 = vld [vmem:[#allocation2] sm:$0xff]
    %s358 = scalar_lea.vmem [#allocation2], 112
    %v359 = vld [vmem:[%s358 + $0x8] sm:$0xff]
    %v360 = vadd.f32 %v357, %v353
    %v361 = vxor.u32 %v360, 2147483648
    %v362 = vmul.f32 %v361, 1.442695
    %v363 = vpow.pop %v362
    %v364 = vadd.f32 %v363, 1.0
    %v365 = vrcp.pop %v364
    %v366 = vmul.f32 1.0, %v365
    %v367 = vtanh.pop %v360
    %v368 = vmul.f32 %v366, 0.0
    %370 = vrot.lane.b32.xlu0 %v367, 32
    %v371 = vpop.permute.xlu0 %370
    %v373 = vmul.f32 %v366, %v371
    %375 = vrot.lane.b32.xlu0 %v373, 32
    %v376 = vpop.permute.xlu0 %375
    %v378 = vadd.f32 %v368, %v376
    %v379 = vtanh.pop %v378
    %381 = vrot.lane.b32.xlu0 %v379, 32
    %v382 = vpop.permute.xlu0 %381
    %v384 = vmul.f32 %v366, %v382
    %v385 = vadd.f32 %v359, %v355
    %v386 = vxor.u32 %v385, 2147483648
    %v387 = vmul.f32 %v386, 1.442695
    %v388 = vpow.pop %v387
    %v389 = vadd.f32 %v388, 1.0
    %v390 = vrcp.pop %v389
    %v391 = vmul.f32 1.0, %v390
    %v392 = vtanh.pop %v385
    %v393 = vmul.f32 %v391, 0.0
    %395 = vrot.lane.b32.xlu0 %v392, 32
    %v396 = vpop.permute.xlu0 %395
    %v398 = vmul.f32 %v391, %v396
    %400 = vrot.lane.b32.xlu0 %v398, 32
    %v401 = vpop.permute.xlu0 %400
    %v403 = vadd.f32 %v393, %v401
    %v404 = vtanh.pop %v403
    %406 = vrot.lane.b32.xlu0 %v404, 32
    %v407 = vpop.permute.xlu0 %406
    %v409 = vmul.f32 %v391, %v407
    %411 = vrot.lane.b32.xlu0 %v384, 64
    %v412 = vpop.permute.xlu0 %411
    %vm414 = vcmask 261120
    %415 = vst.msk [vmem:[#allocation3] sm:$0xff] %vm414, %v412
    %417 = vrot.lane.b32.xlu0 %v409, 64
    %v418 = vpop.permute.xlu0 %417
    %s420 = scalar_lea.vmem [#allocation4], 56
    %421 = vst.msk [vmem:[%s420] sm:$0xff] %vm414, %v418
    %422 = vrot.lane.b32.xlu0 %v409, 96
    %v423 = vpop.permute.xlu0 %422
    %v425 = vsel %vm414, %v412, %v423
    %v427 = vsel %vm282, %v425, 0
    %429 = vmatprep.subr.mxu0 0.0
    %430 = vmatpush1.msra.mxu0 0.0
    %431 = vmatprep.subr.mxu0 0.0
    %432 = vmatpush1.msra.mxu0 0.0
    %433 = vmatprep.subr.mxu0 0.0
    %434 = vmatpush1.msra.mxu0 0.0
    %435 = vmatprep.subr.mxu0 0.0
    %436 = vmatpush1.msra.mxu0 0.0
    %437 = vmatprep.subr.mxu0 0.0
    %438 = vmatpush1.msra.mxu0 0.0
    %439 = vmatprep.subr.mxu0 0.0
    %440 = vmatpush1.msra.mxu0 0.0
    %441 = vmatprep.subr.mxu0 0.0
    %442 = vmatpush1.msra.mxu0 0.0
    %443 = vmatprep.subr.mxu0 0.0
    %444 = vmatpush1.msra.mxu0 0.0
    %445 = vmatprep.subr.mxu0 %v281
    %446 = vmatpush1.msra.mxu0 %v280
    %447 = vmatprep.subr.mxu0 %v279
    %448 = vmatpush1.msra.mxu0 %v278
    %449 = vmatprep.subr.mxu0 %v277
    %450 = vmatpush1.msra.mxu0 %v276
    %451 = vmatprep.subr.mxu0 %v275
    %452 = vmatpush1.msra.mxu0 %v274
    %453 = vmatprep.subr.mxu0 %v273
    %454 = vmatpush1.msra.mxu0 %v272
    %455 = vmatprep.subr.mxu0 %v271
    %456 = vmatpush1.msra.mxu0 %v270
    %457 = vmatprep.subr.mxu0 %v269
    %458 = vmatpush1.msra.mxu0 %v268
    %459 = vmatprep.subr.mxu0 %v267
    %460 = vmatpush1.msra.mxu0 %v266
    %461 = vmatprep.subr.mxu0 0.0
    %462 = vmatpush2.msra.mxu0 0.0
    %463 = vmatprep.subr.mxu0 0.0
    %464 = vmatpush2.msra.mxu0 0.0
    %465 = vmatprep.subr.mxu0 0.0
    %466 = vmatpush2.msra.mxu0 0.0
    %467 = vmatprep.subr.mxu0 0.0
    %468 = vmatpush2.msra.mxu0 0.0
    %469 = vmatprep.subr.mxu0 0.0
    %470 = vmatpush2.msra.mxu0 0.0
    %471 = vmatprep.subr.mxu0 0.0
    %472 = vmatpush2.msra.mxu0 0.0
    %473 = vmatprep.subr.mxu0 0.0
    %474 = vmatpush2.msra.mxu0 0.0
    %475 = vmatprep.subr.mxu0 0.0
    %476 = vmatpush2.msra.mxu0 0.0
    %477 = vmatprep.subr.mxu0 0.0
    %478 = vmatpush2.msra.mxu0 0.0
    %479 = vmatprep.subr.mxu0 0.0
    %480 = vmatpush2.msra.mxu0 0.0
    %481 = vmatprep.subr.mxu0 0.0
    %482 = vmatpush2.msra.mxu0 0.0
    %483 = vmatprep.subr.mxu0 0.0
    %484 = vmatpush2.msra.mxu0 0.0
    %485 = vmatprep.subr.mxu0 0.0
    %486 = vmatpush2.msra.mxu0 0.0
    %487 = vmatprep.subr.mxu0 0.0
    %488 = vmatpush2.msra.mxu0 0.0
    %489 = vmatprep.subr.mxu0 0.0
    %490 = vmatpush2.msra.mxu0 0.0
    %491 = vmatprep.subr.mxu0 0.0
    %492 = vmatpush2.msra.mxu0 0.0
    %493 = vmatprep.mubr.f32.mxu0 0.0
    %494 = vmatmul.mubr.f32.gmra.mxu0 %v427
    %v495 = vpop.f32.mrf.mxu0
    %v496 = vadd.f32 0.0, %v495
    %v497 = vpop.f32.mrf.mxu0
    %v498 = vadd.f32 0.0, %v497
    %499 = vdwg.mxu0
    %s500 = scalar_lea.vmem [#allocation2], 16
    %v501 = vld [vmem:[%s500] sm:$0xff]
    %s502 = scalar_lea.vmem [#allocation2], 96
    %v503 = vld [vmem:[%s502 + $0x8] sm:$0xff]
    %v504 = vadd.f32 %v501, %v496
    %v505 = vxor.u32 %v504, 2147483648
    %v506 = vmul.f32 %v505, 1.442695
    %v507 = vpow.pop %v506
    %v508 = vadd.f32 %v507, 1.0
    %v509 = vrcp.pop %v508
    %v510 = vmul.f32 1.0, %v509
    %v511 = vtanh.pop %v504
    %v512 = vmul.f32 %v510, %v378
    %514 = vrot.lane.b32.xlu0 %v511, 32
    %v515 = vpop.permute.xlu0 %514
    %v517 = vmul.f32 %v510, %v515
    %519 = vrot.lane.b32.xlu0 %v517, 32
    %v520 = vpop.permute.xlu0 %519
    %v522 = vadd.f32 %v512, %v520
    %v523 = vtanh.pop %v522
    %525 = vrot.lane.b32.xlu0 %v523, 32
    %v526 = vpop.permute.xlu0 %525
    %v528 = vmul.f32 %v510, %v526
    %v529 = vadd.f32 %v503, %v498
    %v530 = vxor.u32 %v529, 2147483648
    %v531 = vmul.f32 %v530, 1.442695
    %v532 = vpow.pop %v531
    %v533 = vadd.f32 %v532, 1.0
    %v534 = vrcp.pop %v533
    %v535 = vmul.f32 1.0, %v534
    %v536 = vtanh.pop %v529
    %v537 = vmul.f32 %v535, %v403
    %539 = vrot.lane.b32.xlu0 %v536, 32
    %v540 = vpop.permute.xlu0 %539
    %v542 = vmul.f32 %v535, %v540
    %544 = vrot.lane.b32.xlu0 %v542, 32
    %v545 = vpop.permute.xlu0 %544
    %v547 = vadd.f32 %v537, %v545
    %v548 = vtanh.pop %v547
    %550 = vrot.lane.b32.xlu0 %v548, 32
    %v551 = vpop.permute.xlu0 %550
    %v553 = vmul.f32 %v535, %v551
    %555 = vrot.lane.b32.xlu0 %v528, 64
    %v556 = vpop.permute.xlu0 %555
    %s558 = scalar_lea.vmem [#allocation3], 8
    %559 = vst.msk [vmem:[%s558] sm:$0xff] %vm414, %v556
    %561 = vrot.lane.b32.xlu0 %v553, 64
    %v562 = vpop.permute.xlu0 %561
    %s564 = scalar_lea.vmem [#allocation4], 48
    %565 = vst.msk [vmem:[%s564] sm:$0xff] %vm414, %v562
    %566 = vrot.lane.b32.xlu0 %v553, 96
    %v567 = vpop.permute.xlu0 %566
    %v569 = vsel %vm414, %v556, %v567
    %v571 = vsel %vm282, %v569, 0
    %573 = vmatprep.subr.mxu0 0.0
    %574 = vmatpush1.msra.mxu0 0.0
    %575 = vmatprep.subr.mxu0 0.0
    %576 = vmatpush1.msra.mxu0 0.0
    %577 = vmatprep.subr.mxu0 0.0
    %578 = vmatpush1.msra.mxu0 0.0
    %579 = vmatprep.subr.mxu0 0.0
    %580 = vmatpush1.msra.mxu0 0.0
    %581 = vmatprep.subr.mxu0 0.0
    %582 = vmatpush1.msra.mxu0 0.0
    %583 = vmatprep.subr.mxu0 0.0
    %584 = vmatpush1.msra.mxu0 0.0
    %585 = vmatprep.subr.mxu0 0.0
    %586 = vmatpush1.msra.mxu0 0.0
    %587 = vmatprep.subr.mxu0 0.0
    %588 = vmatpush1.msra.mxu0 0.0
    %589 = vmatprep.subr.mxu0 %v281
    %590 = vmatpush1.msra.mxu0 %v280
    %591 = vmatprep.subr.mxu0 %v279
    %592 = vmatpush1.msra.mxu0 %v278
    %593 = vmatprep.subr.mxu0 %v277
    %594 = vmatpush1.msra.mxu0 %v276
    %595 = vmatprep.subr.mxu0 %v275
    %596 = vmatpush1.msra.mxu0 %v274
    %597 = vmatprep.subr.mxu0 %v273
    %598 = vmatpush1.msra.mxu0 %v272
    %599 = vmatprep.subr.mxu0 %v271
    %600 = vmatpush1.msra.mxu0 %v270
    %601 = vmatprep.subr.mxu0 %v269
    %602 = vmatpush1.msra.mxu0 %v268
    %603 = vmatprep.subr.mxu0 %v267
    %604 = vmatpush1.msra.mxu0 %v266
    %605 = vmatprep.subr.mxu0 0.0
    %606 = vmatpush2.msra.mxu0 0.0
    %607 = vmatprep.subr.mxu0 0.0
    %608 = vmatpush2.msra.mxu0 0.0
    %609 = vmatprep.subr.mxu0 0.0
    %610 = vmatpush2.msra.mxu0 0.0
    %611 = vmatprep.subr.mxu0 0.0
    %612 = vmatpush2.msra.mxu0 0.0
    %613 = vmatprep.subr.mxu0 0.0
    %614 = vmatpush2.msra.mxu0 0.0
    %615 = vmatprep.subr.mxu0 0.0
    %616 = vmatpush2.msra.mxu0 0.0
    %617 = vmatprep.subr.mxu0 0.0
    %618 = vmatpush2.msra.mxu0 0.0
    %619 = vmatprep.subr.mxu0 0.0
    %620 = vmatpush2.msra.mxu0 0.0
    %621 = vmatprep.subr.mxu0 0.0
    %622 = vmatpush2.msra.mxu0 0.0
    %623 = vmatprep.subr.mxu0 0.0
    %624 = vmatpush2.msra.mxu0 0.0
    %625 = vmatprep.subr.mxu0 0.0
    %626 = vmatpush2.msra.mxu0 0.0
    %627 = vmatprep.subr.mxu0 0.0
    %628 = vmatpush2.msra.mxu0 0.0
    %629 = vmatprep.subr.mxu0 0.0
    %630 = vmatpush2.msra.mxu0 0.0
    %631 = vmatprep.subr.mxu0 0.0
    %632 = vmatpush2.msra.mxu0 0.0
    %633 = vmatprep.subr.mxu0 0.0
    %634 = vmatpush2.msra.mxu0 0.0
    %635 = vmatprep.subr.mxu0 0.0
    %636 = vmatpush2.msra.mxu0 0.0
    %637 = vmatprep.mubr.f32.mxu0 0.0
    %638 = vmatmul.mubr.f32.gmra.mxu0 %v571
    %v639 = vpop.f32.mrf.mxu0
    %v640 = vadd.f32 0.0, %v639
    %v641 = vpop.f32.mrf.mxu0
    %v642 = vadd.f32 0.0, %v641
    %643 = vdwg.mxu0
    %s644 = scalar_lea.vmem [#allocation2], 32
    %v645 = vld [vmem:[%s644] sm:$0xff]
    %s646 = scalar_lea.vmem [#allocation2], 80
    %v647 = vld [vmem:[%s646 + $0x8] sm:$0xff]
    %v648 = vadd.f32 %v645, %v640
    %v649 = vxor.u32 %v648, 2147483648
    %v650 = vmul.f32 %v649, 1.442695
    %v651 = vpow.pop %v650
    %v652 = vadd.f32 %v651, 1.0
    %v653 = vrcp.pop %v652
    %v654 = vmul.f32 1.0, %v653
    %v655 = vtanh.pop %v648
    %v656 = vmul.f32 %v654, %v522
    %658 = vrot.lane.b32.xlu0 %v655, 32
    %v659 = vpop.permute.xlu0 %658
    %v661 = vmul.f32 %v654, %v659
    %663 = vrot.lane.b32.xlu0 %v661, 32
    %v664 = vpop.permute.xlu0 %663
    %v666 = vadd.f32 %v656, %v664
    %v667 = vtanh.pop %v666
    %669 = vrot.lane.b32.xlu0 %v667, 32
    %v670 = vpop.permute.xlu0 %669
    %v672 = vmul.f32 %v654, %v670
    %v673 = vadd.f32 %v647, %v642
    %v674 = vxor.u32 %v673, 2147483648
    %v675 = vmul.f32 %v674, 1.442695
    %v676 = vpow.pop %v675
    %v677 = vadd.f32 %v676, 1.0
    %v678 = vrcp.pop %v677
    %v679 = vmul.f32 1.0, %v678
    %v680 = vtanh.pop %v673
    %v681 = vmul.f32 %v679, %v547
    %683 = vrot.lane.b32.xlu0 %v680, 32
    %v684 = vpop.permute.xlu0 %683
    %v686 = vmul.f32 %v679, %v684
    %688 = vrot.lane.b32.xlu0 %v686, 32
    %v689 = vpop.permute.xlu0 %688
    %v691 = vadd.f32 %v681, %v689
    %v692 = vtanh.pop %v691
    %694 = vrot.lane.b32.xlu0 %v692, 32
    %v695 = vpop.permute.xlu0 %694
    %v697 = vmul.f32 %v679, %v695
    %699 = vrot.lane.b32.xlu0 %v672, 64
    %v700 = vpop.permute.xlu0 %699
    %s702 = scalar_lea.vmem [#allocation3], 16
    %703 = vst.msk [vmem:[%s702] sm:$0xff] %vm414, %v700
    %705 = vrot.lane.b32.xlu0 %v697, 64
    %v706 = vpop.permute.xlu0 %705
    %s708 = scalar_lea.vmem [#allocation4], 40
    %709 = vst.msk [vmem:[%s708] sm:$0xff] %vm414, %v706
    %710 = vrot.lane.b32.xlu0 %v697, 96
    %v711 = vpop.permute.xlu0 %710
    %v713 = vsel %vm414, %v700, %v711
    %v715 = vsel %vm282, %v713, 0
    %717 = vmatprep.subr.mxu0 0.0
    %718 = vmatpush1.msra.mxu0 0.0
    %719 = vmatprep.subr.mxu0 0.0
    %720 = vmatpush1.msra.mxu0 0.0
    %721 = vmatprep.subr.mxu0 0.0
    %722 = vmatpush1.msra.mxu0 0.0
    %723 = vmatprep.subr.mxu0 0.0
    %724 = vmatpush1.msra.mxu0 0.0
    %725 = vmatprep.subr.mxu0 0.0
    %726 = vmatpush1.msra.mxu0 0.0
    %727 = vmatprep.subr.mxu0 0.0
    %728 = vmatpush1.msra.mxu0 0.0
    %729 = vmatprep.subr.mxu0 0.0
    %730 = vmatpush1.msra.mxu0 0.0
    %731 = vmatprep.subr.mxu0 0.0
    %732 = vmatpush1.msra.mxu0 0.0
    %733 = vmatprep.subr.mxu0 %v281
    %734 = vmatpush1.msra.mxu0 %v280
    %735 = vmatprep.subr.mxu0 %v279
    %736 = vmatpush1.msra.mxu0 %v278
    %737 = vmatprep.subr.mxu0 %v277
    %738 = vmatpush1.msra.mxu0 %v276
    %739 = vmatprep.subr.mxu0 %v275
    %740 = vmatpush1.msra.mxu0 %v274
    %741 = vmatprep.subr.mxu0 %v273
    %742 = vmatpush1.msra.mxu0 %v272
    %743 = vmatprep.subr.mxu0 %v271
    %744 = vmatpush1.msra.mxu0 %v270
    %745 = vmatprep.subr.mxu0 %v269
    %746 = vmatpush1.msra.mxu0 %v268
    %747 = vmatprep.subr.mxu0 %v267
    %748 = vmatpush1.msra.mxu0 %v266
    %749 = vmatprep.subr.mxu0 0.0
    %750 = vmatpush2.msra.mxu0 0.0
    %751 = vmatprep.subr.mxu0 0.0
    %752 = vmatpush2.msra.mxu0 0.0
    %753 = vmatprep.subr.mxu0 0.0
    %754 = vmatpush2.msra.mxu0 0.0
    %755 = vmatprep.subr.mxu0 0.0
    %756 = vmatpush2.msra.mxu0 0.0
    %757 = vmatprep.subr.mxu0 0.0
    %758 = vmatpush2.msra.mxu0 0.0
    %759 = vmatprep.subr.mxu0 0.0
    %760 = vmatpush2.msra.mxu0 0.0
    %761 = vmatprep.subr.mxu0 0.0
    %762 = vmatpush2.msra.mxu0 0.0
    %763 = vmatprep.subr.mxu0 0.0
    %764 = vmatpush2.msra.mxu0 0.0
    %765 = vmatprep.subr.mxu0 0.0
    %766 = vmatpush2.msra.mxu0 0.0
    %767 = vmatprep.subr.mxu0 0.0
    %768 = vmatpush2.msra.mxu0 0.0
    %769 = vmatprep.subr.mxu0 0.0
    %770 = vmatpush2.msra.mxu0 0.0
    %771 = vmatprep.subr.mxu0 0.0
    %772 = vmatpush2.msra.mxu0 0.0
    %773 = vmatprep.subr.mxu0 0.0
    %774 = vmatpush2.msra.mxu0 0.0
    %775 = vmatprep.subr.mxu0 0.0
    %776 = vmatpush2.msra.mxu0 0.0
    %777 = vmatprep.subr.mxu0 0.0
    %778 = vmatpush2.msra.mxu0 0.0
    %779 = vmatprep.subr.mxu0 0.0
    %780 = vmatpush2.msra.mxu0 0.0
    %781 = vmatprep.mubr.f32.mxu0 0.0
    %782 = vmatmul.mubr.f32.gmra.mxu0 %v715
    %v783 = vpop.f32.mrf.mxu0
    %v784 = vadd.f32 0.0, %v783
    %v785 = vpop.f32.mrf.mxu0
    %v786 = vadd.f32 0.0, %v785
    %787 = vdwg.mxu0
    %s788 = scalar_lea.vmem [#allocation2], 48
    %v789 = vld [vmem:[%s788] sm:$0xff]
    %s790 = scalar_lea.vmem [#allocation2], 64
    %v791 = vld [vmem:[%s790 + $0x8] sm:$0xff]
    %v792 = vadd.f32 %v789, %v784
    %v793 = vxor.u32 %v792, 2147483648
    %v794 = vmul.f32 %v793, 1.442695
    %v795 = vpow.pop %v794
    %v796 = vadd.f32 %v795, 1.0
    %v797 = vrcp.pop %v796
    %v798 = vmul.f32 1.0, %v797
    %v799 = vtanh.pop %v792
    %v800 = vmul.f32 %v798, %v666
    %802 = vrot.lane.b32.xlu0 %v799, 32
    %v803 = vpop.permute.xlu0 %802
    %v805 = vmul.f32 %v798, %v803
    %807 = vrot.lane.b32.xlu0 %v805, 32
    %v808 = vpop.permute.xlu0 %807
    %v810 = vadd.f32 %v800, %v808
    %v811 = vtanh.pop %v810
    %813 = vrot.lane.b32.xlu0 %v811, 32
    %v814 = vpop.permute.xlu0 %813
    %v816 = vmul.f32 %v798, %v814
    %v817 = vadd.f32 %v791, %v786
    %v818 = vxor.u32 %v817, 2147483648
    %v819 = vmul.f32 %v818, 1.442695
    %v820 = vpow.pop %v819
    %v821 = vadd.f32 %v820, 1.0
    %v822 = vrcp.pop %v821
    %v823 = vmul.f32 1.0, %v822
    %v824 = vtanh.pop %v817
    %v825 = vmul.f32 %v823, %v691
    %827 = vrot.lane.b32.xlu0 %v824, 32
    %v828 = vpop.permute.xlu0 %827
    %v830 = vmul.f32 %v823, %v828
    %832 = vrot.lane.b32.xlu0 %v830, 32
    %v833 = vpop.permute.xlu0 %832
    %v835 = vadd.f32 %v825, %v833
    %v836 = vtanh.pop %v835
    %838 = vrot.lane.b32.xlu0 %v836, 32
    %v839 = vpop.permute.xlu0 %838
    %v841 = vmul.f32 %v823, %v839
    %843 = vrot.lane.b32.xlu0 %v816, 64
    %v844 = vpop.permute.xlu0 %843
    %s846 = scalar_lea.vmem [#allocation3], 24
    %847 = vst.msk [vmem:[%s846] sm:$0xff] %vm414, %v844
    %849 = vrot.lane.b32.xlu0 %v841, 64
    %v850 = vpop.permute.xlu0 %849
    %s852 = scalar_lea.vmem [#allocation4], 32
    %853 = vst.msk [vmem:[%s852] sm:$0xff] %vm414, %v850
    %854 = vrot.lane.b32.xlu0 %v841, 96
    %v855 = vpop.permute.xlu0 %854
    %v857 = vsel %vm414, %v844, %v855
    %v859 = vsel %vm282, %v857, 0
    %861 = vmatprep.subr.mxu0 0.0
    %862 = vmatpush1.msra.mxu0 0.0
    %863 = vmatprep.subr.mxu0 0.0
    %864 = vmatpush1.msra.mxu0 0.0
    %865 = vmatprep.subr.mxu0 0.0
    %866 = vmatpush1.msra.mxu0 0.0
    %867 = vmatprep.subr.mxu0 0.0
    %868 = vmatpush1.msra.mxu0 0.0
    %869 = vmatprep.subr.mxu0 0.0
    %870 = vmatpush1.msra.mxu0 0.0
    %871 = vmatprep.subr.mxu0 0.0
    %872 = vmatpush1.msra.mxu0 0.0
    %873 = vmatprep.subr.mxu0 0.0
    %874 = vmatpush1.msra.mxu0 0.0
    %875 = vmatprep.subr.mxu0 0.0
    %876 = vmatpush1.msra.mxu0 0.0
    %877 = vmatprep.subr.mxu0 %v281
    %878 = vmatpush1.msra.mxu0 %v280
    %879 = vmatprep.subr.mxu0 %v279
    %880 = vmatpush1.msra.mxu0 %v278
    %881 = vmatprep.subr.mxu0 %v277
    %882 = vmatpush1.msra.mxu0 %v276
    %883 = vmatprep.subr.mxu0 %v275
    %884 = vmatpush1.msra.mxu0 %v274
    %885 = vmatprep.subr.mxu0 %v273
    %886 = vmatpush1.msra.mxu0 %v272
    %887 = vmatprep.subr.mxu0 %v271
    %888 = vmatpush1.msra.mxu0 %v270
    %889 = vmatprep.subr.mxu0 %v269
    %890 = vmatpush1.msra.mxu0 %v268
    %891 = vmatprep.subr.mxu0 %v267
    %892 = vmatpush1.msra.mxu0 %v266
    %893 = vmatprep.subr.mxu0 0.0
    %894 = vmatpush2.msra.mxu0 0.0
    %895 = vmatprep.subr.mxu0 0.0
    %896 = vmatpush2.msra.mxu0 0.0
    %897 = vmatprep.subr.mxu0 0.0
    %898 = vmatpush2.msra.mxu0 0.0
    %899 = vmatprep.subr.mxu0 0.0
    %900 = vmatpush2.msra.mxu0 0.0
    %901 = vmatprep.subr.mxu0 0.0
    %902 = vmatpush2.msra.mxu0 0.0
    %903 = vmatprep.subr.mxu0 0.0
    %904 = vmatpush2.msra.mxu0 0.0
    %905 = vmatprep.subr.mxu0 0.0
    %906 = vmatpush2.msra.mxu0 0.0
    %907 = vmatprep.subr.mxu0 0.0
    %908 = vmatpush2.msra.mxu0 0.0
    %909 = vmatprep.subr.mxu0 0.0
    %910 = vmatpush2.msra.mxu0 0.0
    %911 = vmatprep.subr.mxu0 0.0
    %912 = vmatpush2.msra.mxu0 0.0
    %913 = vmatprep.subr.mxu0 0.0
    %914 = vmatpush2.msra.mxu0 0.0
    %915 = vmatprep.subr.mxu0 0.0
    %916 = vmatpush2.msra.mxu0 0.0
    %917 = vmatprep.subr.mxu0 0.0
    %918 = vmatpush2.msra.mxu0 0.0
    %919 = vmatprep.subr.mxu0 0.0
    %920 = vmatpush2.msra.mxu0 0.0
    %921 = vmatprep.subr.mxu0 0.0
    %922 = vmatpush2.msra.mxu0 0.0
    %923 = vmatprep.subr.mxu0 0.0
    %924 = vmatpush2.msra.mxu0 0.0
    %925 = vmatprep.mubr.f32.mxu0 0.0
    %926 = vmatmul.mubr.f32.gmra.mxu0 %v859
    %v927 = vpop.f32.mrf.mxu0
    %v928 = vadd.f32 0.0, %v927
    %v929 = vpop.f32.mrf.mxu0
    %v930 = vadd.f32 0.0, %v929
    %931 = vdwg.mxu0
    %v932 = vld [vmem:[%s790] sm:$0xff]
    %v933 = vld [vmem:[%s788 + $0x8] sm:$0xff]
    %v934 = vadd.f32 %v932, %v928
    %v935 = vxor.u32 %v934, 2147483648
    %v936 = vmul.f32 %v935, 1.442695
    %v937 = vpow.pop %v936
    %v938 = vadd.f32 %v937, 1.0
    %v939 = vrcp.pop %v938
    %v940 = vmul.f32 1.0, %v939
    %v941 = vtanh.pop %v934
    %v942 = vmul.f32 %v940, %v810
    %944 = vrot.lane.b32.xlu0 %v941, 32
    %v945 = vpop.permute.xlu0 %944
    %v947 = vmul.f32 %v940, %v945
    %949 = vrot.lane.b32.xlu0 %v947, 32
    %v950 = vpop.permute.xlu0 %949
    %v952 = vadd.f32 %v942, %v950
    %v953 = vtanh.pop %v952
    %955 = vrot.lane.b32.xlu0 %v953, 32
    %v956 = vpop.permute.xlu0 %955
    %v958 = vmul.f32 %v940, %v956
    %v959 = vadd.f32 %v933, %v930
    %v960 = vxor.u32 %v959, 2147483648
    %v961 = vmul.f32 %v960, 1.442695
    %v962 = vpow.pop %v961
    %v963 = vadd.f32 %v962, 1.0
    %v964 = vrcp.pop %v963
    %v965 = vmul.f32 1.0, %v964
    %v966 = vtanh.pop %v959
    %v967 = vmul.f32 %v965, %v835
    %969 = vrot.lane.b32.xlu0 %v966, 32
    %v970 = vpop.permute.xlu0 %969
    %v972 = vmul.f32 %v965, %v970
    %974 = vrot.lane.b32.xlu0 %v972, 32
    %v975 = vpop.permute.xlu0 %974
    %v977 = vadd.f32 %v967, %v975
    %v978 = vtanh.pop %v977
    %980 = vrot.lane.b32.xlu0 %v978, 32
    %v981 = vpop.permute.xlu0 %980
    %v983 = vmul.f32 %v965, %v981
    %985 = vrot.lane.b32.xlu0 %v958, 64
    %v986 = vpop.permute.xlu0 %985
    %s988 = scalar_lea.vmem [#allocation3], 32
    %989 = vst.msk [vmem:[%s988] sm:$0xff] %vm414, %v986
    %991 = vrot.lane.b32.xlu0 %v983, 64
    %v992 = vpop.permute.xlu0 %991
    %s994 = scalar_lea.vmem [#allocation4], 24
    %995 = vst.msk [vmem:[%s994] sm:$0xff] %vm414, %v992
    %996 = vrot.lane.b32.xlu0 %v983, 96
    %v997 = vpop.permute.xlu0 %996
    %v999 = vsel %vm414, %v986, %v997
    %v1001 = vsel %vm282, %v999, 0
    %1003 = vmatprep.subr.mxu0 0.0
    %1004 = vmatpush1.msra.mxu0 0.0
    %1005 = vmatprep.subr.mxu0 0.0
    %1006 = vmatpush1.msra.mxu0 0.0
    %1007 = vmatprep.subr.mxu0 0.0
    %1008 = vmatpush1.msra.mxu0 0.0
    %1009 = vmatprep.subr.mxu0 0.0
    %1010 = vmatpush1.msra.mxu0 0.0
    %1011 = vmatprep.subr.mxu0 0.0
    %1012 = vmatpush1.msra.mxu0 0.0
    %1013 = vmatprep.subr.mxu0 0.0
    %1014 = vmatpush1.msra.mxu0 0.0
    %1015 = vmatprep.subr.mxu0 0.0
    %1016 = vmatpush1.msra.mxu0 0.0
    %1017 = vmatprep.subr.mxu0 0.0
    %1018 = vmatpush1.msra.mxu0 0.0
    %1019 = vmatprep.subr.mxu0 %v281
    %1020 = vmatpush1.msra.mxu0 %v280
    %1021 = vmatprep.subr.mxu0 %v279
    %1022 = vmatpush1.msra.mxu0 %v278
    %1023 = vmatprep.subr.mxu0 %v277
    %1024 = vmatpush1.msra.mxu0 %v276
    %1025 = vmatprep.subr.mxu0 %v275
    %1026 = vmatpush1.msra.mxu0 %v274
    %1027 = vmatprep.subr.mxu0 %v273
    %1028 = vmatpush1.msra.mxu0 %v272
    %1029 = vmatprep.subr.mxu0 %v271
    %1030 = vmatpush1.msra.mxu0 %v270
    %1031 = vmatprep.subr.mxu0 %v269
    %1032 = vmatpush1.msra.mxu0 %v268
    %1033 = vmatprep.subr.mxu0 %v267
    %1034 = vmatpush1.msra.mxu0 %v266
    %1035 = vmatprep.subr.mxu0 0.0
    %1036 = vmatpush2.msra.mxu0 0.0
    %1037 = vmatprep.subr.mxu0 0.0
    %1038 = vmatpush2.msra.mxu0 0.0
    %1039 = vmatprep.subr.mxu0 0.0
    %1040 = vmatpush2.msra.mxu0 0.0
    %1041 = vmatprep.subr.mxu0 0.0
    %1042 = vmatpush2.msra.mxu0 0.0
    %1043 = vmatprep.subr.mxu0 0.0
    %1044 = vmatpush2.msra.mxu0 0.0
    %1045 = vmatprep.subr.mxu0 0.0
    %1046 = vmatpush2.msra.mxu0 0.0
    %1047 = vmatprep.subr.mxu0 0.0
    %1048 = vmatpush2.msra.mxu0 0.0
    %1049 = vmatprep.subr.mxu0 0.0
    %1050 = vmatpush2.msra.mxu0 0.0
    %1051 = vmatprep.subr.mxu0 0.0
    %1052 = vmatpush2.msra.mxu0 0.0
    %1053 = vmatprep.subr.mxu0 0.0
    %1054 = vmatpush2.msra.mxu0 0.0
    %1055 = vmatprep.subr.mxu0 0.0
    %1056 = vmatpush2.msra.mxu0 0.0
    %1057 = vmatprep.subr.mxu0 0.0
    %1058 = vmatpush2.msra.mxu0 0.0
    %1059 = vmatprep.subr.mxu0 0.0
    %1060 = vmatpush2.msra.mxu0 0.0
    %1061 = vmatprep.subr.mxu0 0.0
    %1062 = vmatpush2.msra.mxu0 0.0
    %1063 = vmatprep.subr.mxu0 0.0
    %1064 = vmatpush2.msra.mxu0 0.0
    %1065 = vmatprep.subr.mxu0 0.0
    %1066 = vmatpush2.msra.mxu0 0.0
    %1067 = vmatprep.mubr.f32.mxu0 0.0
    %1068 = vmatmul.mubr.f32.gmra.mxu0 %v1001
    %v1069 = vpop.f32.mrf.mxu0
    %v1070 = vadd.f32 0.0, %v1069
    %v1071 = vpop.f32.mrf.mxu0
    %v1072 = vadd.f32 0.0, %v1071
    %1073 = vdwg.mxu0
    %v1074 = vld [vmem:[%s646] sm:$0xff]
    %v1075 = vld [vmem:[%s644 + $0x8] sm:$0xff]
    %v1076 = vadd.f32 %v1074, %v1070
    %v1077 = vxor.u32 %v1076, 2147483648
    %v1078 = vmul.f32 %v1077, 1.442695
    %v1079 = vpow.pop %v1078
    %v1080 = vadd.f32 %v1079, 1.0
    %v1081 = vrcp.pop %v1080
    %v1082 = vmul.f32 1.0, %v1081
    %v1083 = vtanh.pop %v1076
    %v1084 = vmul.f32 %v1082, %v952
    %1086 = vrot.lane.b32.xlu0 %v1083, 32
    %v1087 = vpop.permute.xlu0 %1086
    %v1089 = vmul.f32 %v1082, %v1087
    %1091 = vrot.lane.b32.xlu0 %v1089, 32
    %v1092 = vpop.permute.xlu0 %1091
    %v1094 = vadd.f32 %v1084, %v1092
    %v1095 = vtanh.pop %v1094
    %1097 = vrot.lane.b32.xlu0 %v1095, 32
    %v1098 = vpop.permute.xlu0 %1097
    %v1100 = vmul.f32 %v1082, %v1098
    %v1101 = vadd.f32 %v1075, %v1072
    %v1102 = vxor.u32 %v1101, 2147483648
    %v1103 = vmul.f32 %v1102, 1.442695
    %v1104 = vpow.pop %v1103
    %v1105 = vadd.f32 %v1104, 1.0
    %v1106 = vrcp.pop %v1105
    %v1107 = vmul.f32 1.0, %v1106
    %v1108 = vtanh.pop %v1101
    %v1109 = vmul.f32 %v1107, %v977
    %1111 = vrot.lane.b32.xlu0 %v1108, 32
    %v1112 = vpop.permute.xlu0 %1111
    %v1114 = vmul.f32 %v1107, %v1112
    %1116 = vrot.lane.b32.xlu0 %v1114, 32
    %v1117 = vpop.permute.xlu0 %1116
    %v1119 = vadd.f32 %v1109, %v1117
    %v1120 = vtanh.pop %v1119
    %1122 = vrot.lane.b32.xlu0 %v1120, 32
    %v1123 = vpop.permute.xlu0 %1122
    %v1125 = vmul.f32 %v1107, %v1123
    %1127 = vrot.lane.b32.xlu0 %v1100, 64
    %v1128 = vpop.permute.xlu0 %1127
    %s1130 = scalar_lea.vmem [#allocation3], 40
    %1131 = vst.msk [vmem:[%s1130] sm:$0xff] %vm414, %v1128
    %1133 = vrot.lane.b32.xlu0 %v1125, 64
    %v1134 = vpop.permute.xlu0 %1133
    %s1136 = scalar_lea.vmem [#allocation4], 16
    %1137 = vst.msk [vmem:[%s1136] sm:$0xff] %vm414, %v1134
    %1138 = vrot.lane.b32.xlu0 %v1125, 96
    %v1139 = vpop.permute.xlu0 %1138
    %v1141 = vsel %vm414, %v1128, %v1139
    %v1143 = vsel %vm282, %v1141, 0
    %1145 = vmatprep.subr.mxu0 0.0
    %1146 = vmatpush1.msra.mxu0 0.0
    %1147 = vmatprep.subr.mxu0 0.0
    %1148 = vmatpush1.msra.mxu0 0.0
    %1149 = vmatprep.subr.mxu0 0.0
    %1150 = vmatpush1.msra.mxu0 0.0
    %1151 = vmatprep.subr.mxu0 0.0
    %1152 = vmatpush1.msra.mxu0 0.0
    %1153 = vmatprep.subr.mxu0 0.0
    %1154 = vmatpush1.msra.mxu0 0.0
    %1155 = vmatprep.subr.mxu0 0.0
    %1156 = vmatpush1.msra.mxu0 0.0
    %1157 = vmatprep.subr.mxu0 0.0
    %1158 = vmatpush1.msra.mxu0 0.0
    %1159 = vmatprep.subr.mxu0 0.0
    %1160 = vmatpush1.msra.mxu0 0.0
    %1161 = vmatprep.subr.mxu0 %v281
    %1162 = vmatpush1.msra.mxu0 %v280
    %1163 = vmatprep.subr.mxu0 %v279
    %1164 = vmatpush1.msra.mxu0 %v278
    %1165 = vmatprep.subr.mxu0 %v277
    %1166 = vmatpush1.msra.mxu0 %v276
    %1167 = vmatprep.subr.mxu0 %v275
    %1168 = vmatpush1.msra.mxu0 %v274
    %1169 = vmatprep.subr.mxu0 %v273
    %1170 = vmatpush1.msra.mxu0 %v272
    %1171 = vmatprep.subr.mxu0 %v271
    %1172 = vmatpush1.msra.mxu0 %v270
    %1173 = vmatprep.subr.mxu0 %v269
    %1174 = vmatpush1.msra.mxu0 %v268
    %1175 = vmatprep.subr.mxu0 %v267
    %1176 = vmatpush1.msra.mxu0 %v266
    %1177 = vmatprep.subr.mxu0 0.0
    %1178 = vmatpush2.msra.mxu0 0.0
    %1179 = vmatprep.subr.mxu0 0.0
    %1180 = vmatpush2.msra.mxu0 0.0
    %1181 = vmatprep.subr.mxu0 0.0
    %1182 = vmatpush2.msra.mxu0 0.0
    %1183 = vmatprep.subr.mxu0 0.0
    %1184 = vmatpush2.msra.mxu0 0.0
    %1185 = vmatprep.subr.mxu0 0.0
    %1186 = vmatpush2.msra.mxu0 0.0
    %1187 = vmatprep.subr.mxu0 0.0
    %1188 = vmatpush2.msra.mxu0 0.0
    %1189 = vmatprep.subr.mxu0 0.0
    %1190 = vmatpush2.msra.mxu0 0.0
    %1191 = vmatprep.subr.mxu0 0.0
    %1192 = vmatpush2.msra.mxu0 0.0
    %1193 = vmatprep.subr.mxu0 0.0
    %1194 = vmatpush2.msra.mxu0 0.0
    %1195 = vmatprep.subr.mxu0 0.0
    %1196 = vmatpush2.msra.mxu0 0.0
    %1197 = vmatprep.subr.mxu0 0.0
    %1198 = vmatpush2.msra.mxu0 0.0
    %1199 = vmatprep.subr.mxu0 0.0
    %1200 = vmatpush2.msra.mxu0 0.0
    %1201 = vmatprep.subr.mxu0 0.0
    %1202 = vmatpush2.msra.mxu0 0.0
    %1203 = vmatprep.subr.mxu0 0.0
    %1204 = vmatpush2.msra.mxu0 0.0
    %1205 = vmatprep.subr.mxu0 0.0
    %1206 = vmatpush2.msra.mxu0 0.0
    %1207 = vmatprep.subr.mxu0 0.0
    %1208 = vmatpush2.msra.mxu0 0.0
    %1209 = vmatprep.mubr.f32.mxu0 0.0
    %1210 = vmatmul.mubr.f32.gmra.mxu0 %v1143
    %v1211 = vpop.f32.mrf.mxu0
    %v1212 = vadd.f32 0.0, %v1211
    %v1213 = vpop.f32.mrf.mxu0
    %v1214 = vadd.f32 0.0, %v1213
    %1215 = vdwg.mxu0
    %v1216 = vld [vmem:[%s502] sm:$0xff]
    %v1217 = vld [vmem:[%s500 + $0x8] sm:$0xff]
    %v1218 = vadd.f32 %v1216, %v1212
    %v1219 = vxor.u32 %v1218, 2147483648
    %v1220 = vmul.f32 %v1219, 1.442695
    %v1221 = vpow.pop %v1220
    %v1222 = vadd.f32 %v1221, 1.0
    %v1223 = vrcp.pop %v1222
    %v1224 = vmul.f32 1.0, %v1223
    %v1225 = vtanh.pop %v1218
    %v1226 = vmul.f32 %v1224, %v1094
    %1228 = vrot.lane.b32.xlu0 %v1225, 32
    %v1229 = vpop.permute.xlu0 %1228
    %v1231 = vmul.f32 %v1224, %v1229
    %1233 = vrot.lane.b32.xlu0 %v1231, 32
    %v1234 = vpop.permute.xlu0 %1233
    %v1236 = vadd.f32 %v1226, %v1234
    %v1237 = vtanh.pop %v1236
    %1239 = vrot.lane.b32.xlu0 %v1237, 32
    %v1240 = vpop.permute.xlu0 %1239
    %v1242 = vmul.f32 %v1224, %v1240
    %v1243 = vadd.f32 %v1217, %v1214
    %v1244 = vxor.u32 %v1243, 2147483648
    %v1245 = vmul.f32 %v1244, 1.442695
    %v1246 = vpow.pop %v1245
    %v1247 = vadd.f32 %v1246, 1.0
    %v1248 = vrcp.pop %v1247
    %v1249 = vmul.f32 1.0, %v1248
    %v1250 = vtanh.pop %v1243
    %v1251 = vmul.f32 %v1249, %v1119
    %1253 = vrot.lane.b32.xlu0 %v1250, 32
    %v1254 = vpop.permute.xlu0 %1253
    %v1256 = vmul.f32 %v1249, %v1254
    %1258 = vrot.lane.b32.xlu0 %v1256, 32
    %v1259 = vpop.permute.xlu0 %1258
    %v1261 = vadd.f32 %v1251, %v1259
    %v1262 = vtanh.pop %v1261
    %1264 = vrot.lane.b32.xlu0 %v1262, 32
    %v1265 = vpop.permute.xlu0 %1264
    %v1267 = vmul.f32 %v1249, %v1265
    %1269 = vrot.lane.b32.xlu0 %v1242, 64
    %v1270 = vpop.permute.xlu0 %1269
    %s1272 = scalar_lea.vmem [#allocation3], 48
    %1273 = vst.msk [vmem:[%s1272] sm:$0xff] %vm414, %v1270
    %1275 = vrot.lane.b32.xlu0 %v1267, 64
    %v1276 = vpop.permute.xlu0 %1275
    %s1278 = scalar_lea.vmem [#allocation4], 8
    %1279 = vst.msk [vmem:[%s1278] sm:$0xff] %vm414, %v1276
    %1280 = vrot.lane.b32.xlu0 %v1267, 96
    %v1281 = vpop.permute.xlu0 %1280
    %v1283 = vsel %vm414, %v1270, %v1281
    %v1285 = vsel %vm282, %v1283, 0
    %1287 = vmatprep.subr.mxu0 0.0
    %1288 = vmatpush1.msra.mxu0 0.0
    %1289 = vmatprep.subr.mxu0 0.0
    %1290 = vmatpush1.msra.mxu0 0.0
    %1291 = vmatprep.subr.mxu0 0.0
    %1292 = vmatpush1.msra.mxu0 0.0
    %1293 = vmatprep.subr.mxu0 0.0
    %1294 = vmatpush1.msra.mxu0 0.0
    %1295 = vmatprep.subr.mxu0 0.0
    %1296 = vmatpush1.msra.mxu0 0.0
    %1297 = vmatprep.subr.mxu0 0.0
    %1298 = vmatpush1.msra.mxu0 0.0
    %1299 = vmatprep.subr.mxu0 0.0
    %1300 = vmatpush1.msra.mxu0 0.0
    %1301 = vmatprep.subr.mxu0 0.0
    %1302 = vmatpush1.msra.mxu0 0.0
    %1303 = vmatprep.subr.mxu0 %v281
    %1304 = vmatpush1.msra.mxu0 %v280
    %1305 = vmatprep.subr.mxu0 %v279
    %1306 = vmatpush1.msra.mxu0 %v278
    %1307 = vmatprep.subr.mxu0 %v277
    %1308 = vmatpush1.msra.mxu0 %v276
    %1309 = vmatprep.subr.mxu0 %v275
    %1310 = vmatpush1.msra.mxu0 %v274
    %1311 = vmatprep.subr.mxu0 %v273
    %1312 = vmatpush1.msra.mxu0 %v272
    %1313 = vmatprep.subr.mxu0 %v271
    %1314 = vmatpush1.msra.mxu0 %v270
    %1315 = vmatprep.subr.mxu0 %v269
    %1316 = vmatpush1.msra.mxu0 %v268
    %1317 = vmatprep.subr.mxu0 %v267
    %1318 = vmatpush1.msra.mxu0 %v266
    %1319 = vmatprep.subr.mxu0 0.0
    %1320 = vmatpush2.msra.mxu0 0.0
    %1321 = vmatprep.subr.mxu0 0.0
    %1322 = vmatpush2.msra.mxu0 0.0
    %1323 = vmatprep.subr.mxu0 0.0
    %1324 = vmatpush2.msra.mxu0 0.0
    %1325 = vmatprep.subr.mxu0 0.0
    %1326 = vmatpush2.msra.mxu0 0.0
    %1327 = vmatprep.subr.mxu0 0.0
    %1328 = vmatpush2.msra.mxu0 0.0
    %1329 = vmatprep.subr.mxu0 0.0
    %1330 = vmatpush2.msra.mxu0 0.0
    %1331 = vmatprep.subr.mxu0 0.0
    %1332 = vmatpush2.msra.mxu0 0.0
    %1333 = vmatprep.subr.mxu0 0.0
    %1334 = vmatpush2.msra.mxu0 0.0
    %1335 = vmatprep.subr.mxu0 0.0
    %1336 = vmatpush2.msra.mxu0 0.0
    %1337 = vmatprep.subr.mxu0 0.0
    %1338 = vmatpush2.msra.mxu0 0.0
    %1339 = vmatprep.subr.mxu0 0.0
    %1340 = vmatpush2.msra.mxu0 0.0
    %1341 = vmatprep.subr.mxu0 0.0
    %1342 = vmatpush2.msra.mxu0 0.0
    %1343 = vmatprep.subr.mxu0 0.0
    %1344 = vmatpush2.msra.mxu0 0.0
    %1345 = vmatprep.subr.mxu0 0.0
    %1346 = vmatpush2.msra.mxu0 0.0
    %1347 = vmatprep.subr.mxu0 0.0
    %1348 = vmatpush2.msra.mxu0 0.0
    %1349 = vmatprep.subr.mxu0 0.0
    %1350 = vmatpush2.msra.mxu0 0.0
    %1351 = vmatprep.mubr.f32.mxu0 0.0
    %1352 = vmatmul.mubr.f32.gmra.mxu0 %v1285
    %v1353 = vpop.f32.mrf.mxu0
    %v1354 = vadd.f32 0.0, %v1353
    %v1355 = vpop.f32.mrf.mxu0
    %v1356 = vadd.f32 0.0, %v1355
    %1357 = vdwg.mxu0
    %v1358 = vld [vmem:[%s358] sm:$0xff]
    %v1359 = vld [vmem:[#allocation2 + $0x8] sm:$0xff]
    %v1360 = vadd.f32 %v1358, %v1354
    %v1361 = vxor.u32 %v1360, 2147483648
    %v1362 = vmul.f32 %v1361, 1.442695
    %v1363 = vpow.pop %v1362
    %v1364 = vadd.f32 %v1363, 1.0
    %v1365 = vrcp.pop %v1364
    %v1366 = vmul.f32 1.0, %v1365
    %v1367 = vtanh.pop %v1360
    %v1368 = vmul.f32 %v1366, %v1236
    %1370 = vrot.lane.b32.xlu0 %v1367, 32
    %v1371 = vpop.permute.xlu0 %1370
    %v1373 = vmul.f32 %v1366, %v1371
    %1375 = vrot.lane.b32.xlu0 %v1373, 32
    %v1376 = vpop.permute.xlu0 %1375
    %v1378 = vadd.f32 %v1368, %v1376
    %v1379 = vtanh.pop %v1378
    %1381 = vrot.lane.b32.xlu0 %v1379, 32
    %v1382 = vpop.permute.xlu0 %1381
    %v1384 = vmul.f32 %v1366, %v1382
    %v1385 = vadd.f32 %v1359, %v1356
    %v1386 = vxor.u32 %v1385, 2147483648
    %v1387 = vmul.f32 %v1386, 1.442695
    %v1388 = vpow.pop %v1387
    %v1389 = vadd.f32 %v1388, 1.0
    %v1390 = vrcp.pop %v1389
    %v1391 = vmul.f32 1.0, %v1390
    %v1392 = vtanh.pop %v1385
    %v1393 = vmul.f32 %v1391, %v1261
    %1395 = vrot.lane.b32.xlu0 %v1392, 32
    %v1396 = vpop.permute.xlu0 %1395
    %v1398 = vmul.f32 %v1391, %v1396
    %1400 = vrot.lane.b32.xlu0 %v1398, 32
    %v1401 = vpop.permute.xlu0 %1400
    %v1403 = vadd.f32 %v1393, %v1401
    %v1404 = vtanh.pop %v1403
    %1406 = vrot.lane.b32.xlu0 %v1404, 32
    %v1407 = vpop.permute.xlu0 %1406
    %v1409 = vmul.f32 %v1391, %v1407
    %1411 = vrot.lane.b32.xlu0 %v1384, 64
    %v1412 = vpop.permute.xlu0 %1411
    %s1414 = scalar_lea.vmem [#allocation3], 56
    %1415 = vst.msk [vmem:[%s1414] sm:$0xff] %vm414, %v1412
    %1417 = vrot.lane.b32.xlu0 %v1409, 64
    %v1418 = vpop.permute.xlu0 %1417
    %1420 = vst.msk [vmem:[#allocation4] sm:$0xff] %vm414, %v1418
    %v1421 = vld [vmem:[#allocation3] sm:$0xff]
    %v1422 = vld [vmem:[#allocation3 + $0x8] sm:$0xff]
    %v1423 = vld [vmem:[#allocation3 + $0x10] sm:$0xff]
    %v1424 = vld [vmem:[#allocation3 + $0x18] sm:$0xff]
    %v1425 = vld [vmem:[#allocation3 + $0x20] sm:$0xff]
    %v1426 = vld [vmem:[#allocation3 + $0x28] sm:$0xff]
    %v1427 = vld [vmem:[#allocation3 + $0x30] sm:$0xff]
    %v1428 = vld [vmem:[#allocation3 + $0x38] sm:$0xff]
    %v1429 = vld [vmem:[#allocation4] sm:$0xff]
    %v1430 = vld [vmem:[#allocation4 + $0x8] sm:$0xff]
    %v1431 = vld [vmem:[#allocation4 + $0x10] sm:$0xff]
    %v1432 = vld [vmem:[#allocation4 + $0x18] sm:$0xff]
    %v1433 = vld [vmem:[#allocation4 + $0x20] sm:$0xff]
    %v1434 = vld [vmem:[#allocation4 + $0x28] sm:$0xff]
    %v1435 = vld [vmem:[#allocation4 + $0x30] sm:$0xff]
    %v1436 = vld [vmem:[#allocation4 + $0x38] sm:$0xff]
    %1445 = vrot.lane.b32.xlu0 %v1429, 32
    %v1446 = vpop.permute.xlu0 %1445
    %1447 = vrot.lane.b32.xlu0 %v1430, 32
    %v1448 = vpop.permute.xlu0 %1447
    %1449 = vrot.lane.b32.xlu0 %v1431, 32
    %v1450 = vpop.permute.xlu0 %1449
    %1451 = vrot.lane.b32.xlu0 %v1432, 32
    %v1452 = vpop.permute.xlu0 %1451
    %1453 = vrot.lane.b32.xlu0 %v1433, 32
    %v1454 = vpop.permute.xlu0 %1453
    %1455 = vrot.lane.b32.xlu0 %v1434, 32
    %v1456 = vpop.permute.xlu0 %1455
    %1457 = vrot.lane.b32.xlu0 %v1435, 32
    %v1458 = vpop.permute.xlu0 %1457
    %1459 = vrot.lane.b32.xlu0 %v1436, 32
    %v1460 = vpop.permute.xlu0 %1459
    %v1469 = vsel %vm414, %v1421, %v1446
    %v1470 = vsel %vm414, %v1422, %v1448
    %v1471 = vsel %vm414, %v1423, %v1450
    %v1472 = vsel %vm414, %v1424, %v1452
    %v1473 = vsel %vm414, %v1425, %v1454
    %v1474 = vsel %vm414, %v1426, %v1456
    %v1475 = vsel %vm414, %v1427, %v1458
    %v1476 = vsel %vm414, %v1428, %v1460
    %v1477 = vmax.f32 %v1469, 0.0
    %v1478 = vmax.f32 %v1470, 0.0
    %v1479 = vmax.f32 %v1471, 0.0
    %v1480 = vmax.f32 %v1472, 0.0
    %v1481 = vmax.f32 %v1473, 0.0
    %v1482 = vmax.f32 %v1474, 0.0
    %v1483 = vmax.f32 %v1475, 0.0
    %v1484 = vmax.f32 %v1476, 0.0
    %v1485 = vld [vmem:[#allocation11] sm:$0xff]
    %v1486 = vld [vmem:[#allocation11 + $0x8] sm:$0xff]
    %v1487 = vld [vmem:[#allocation11 + $0x10] sm:$0xff]
    %v1488 = vld [vmem:[#allocation11 + $0x18] sm:$0xff]
    %v1489 = vld [vmem:[#allocation11 + $0x20] sm:$0xff]
    %v1490 = vld [vmem:[#allocation11 + $0x28] sm:$0xff]
    %v1491 = vld [vmem:[#allocation11 + $0x30] sm:$0xff]
    %v1492 = vld [vmem:[#allocation11 + $0x38] sm:$0xff]
    %v1493 = vld [vmem:[%s5] sm:$0x1]
    %v1495 = vlaneseq
    %v1496 = vshrl.u32 %v1495, 7
    %v1497 = vsub.s32 0, %v1496
    %v1498 = vrot.slane %v1493, %v1497
    %v1501 = vsel %vm282, %v1477, 0
    %v1504 = vsel %vm282, %v1478, 0
    %v1507 = vsel %vm282, %v1479, 0
    %v1510 = vsel %vm282, %v1480, 0
    %v1513 = vsel %vm282, %v1481, 0
    %v1516 = vsel %vm282, %v1482, 0
    %v1519 = vsel %vm282, %v1483, 0
    %v1522 = vsel %vm282, %v1484, 0
    %1524 = vmatprep.subr.mxu0 0.0
    %1525 = vmatpush1.msra.mxu0 0.0
    %1526 = vmatprep.subr.mxu0 0.0
    %1527 = vmatpush1.msra.mxu0 0.0
    %1528 = vmatprep.subr.mxu0 0.0
    %1529 = vmatpush1.msra.mxu0 0.0
    %1530 = vmatprep.subr.mxu0 0.0
    %1531 = vmatpush1.msra.mxu0 0.0
    %1532 = vmatprep.subr.mxu0 0.0
    %1533 = vmatpush1.msra.mxu0 0.0
    %1534 = vmatprep.subr.mxu0 0.0
    %1535 = vmatpush1.msra.mxu0 0.0
    %1536 = vmatprep.subr.mxu0 0.0
    %1537 = vmatpush1.msra.mxu0 0.0
    %1538 = vmatprep.subr.mxu0 0.0
    %1539 = vmatpush1.msra.mxu0 0.0
    %1540 = vmatprep.subr.mxu0 0.0
    %1541 = vmatpush1.msra.mxu0 %v1492
    %1542 = vmatprep.subr.mxu0 0.0
    %1543 = vmatpush1.msra.mxu0 %v1491
    %1544 = vmatprep.subr.mxu0 0.0
    %1545 = vmatpush1.msra.mxu0 %v1490
    %1546 = vmatprep.subr.mxu0 0.0
    %1547 = vmatpush1.msra.mxu0 %v1489
    %1548 = vmatprep.subr.mxu0 0.0
    %1549 = vmatpush1.msra.mxu0 %v1488
    %1550 = vmatprep.subr.mxu0 0.0
    %1551 = vmatpush1.msra.mxu0 %v1487
    %1552 = vmatprep.subr.mxu0 0.0
    %1553 = vmatpush1.msra.mxu0 %v1486
    %1554 = vmatprep.subr.mxu0 0.0
    %1555 = vmatpush1.msra.mxu0 %v1485
    %1556 = vmatprep.subr.mxu0 0.0
    %1557 = vmatpush2.msra.mxu0 0.0
    %1558 = vmatprep.subr.mxu0 0.0
    %1559 = vmatpush2.msra.mxu0 0.0
    %1560 = vmatprep.subr.mxu0 0.0
    %1561 = vmatpush2.msra.mxu0 0.0
    %1562 = vmatprep.subr.mxu0 0.0
    %1563 = vmatpush2.msra.mxu0 0.0
    %1564 = vmatprep.subr.mxu0 0.0
    %1565 = vmatpush2.msra.mxu0 0.0
    %1566 = vmatprep.subr.mxu0 0.0
    %1567 = vmatpush2.msra.mxu0 0.0
    %1568 = vmatprep.subr.mxu0 0.0
    %1569 = vmatpush2.msra.mxu0 0.0
    %1570 = vmatprep.subr.mxu0 0.0
    %1571 = vmatpush2.msra.mxu0 0.0
    %1572 = vmatprep.subr.mxu0 0.0
    %1573 = vmatpush2.msra.mxu0 0.0
    %1574 = vmatprep.subr.mxu0 0.0
    %1575 = vmatpush2.msra.mxu0 0.0
    %1576 = vmatprep.subr.mxu0 0.0
    %1577 = vmatpush2.msra.mxu0 0.0
    %1578 = vmatprep.subr.mxu0 0.0
    %1579 = vmatpush2.msra.mxu0 0.0
    %1580 = vmatprep.subr.mxu0 0.0
    %1581 = vmatpush2.msra.mxu0 0.0
    %1582 = vmatprep.subr.mxu0 0.0
    %1583 = vmatpush2.msra.mxu0 0.0
    %1584 = vmatprep.subr.mxu0 0.0
    %1585 = vmatpush2.msra.mxu0 0.0
    %1586 = vmatprep.subr.mxu0 0.0
    %1587 = vmatpush2.msra.mxu0 0.0
    %1588 = vmatprep.mubr.f32.mxu0 0.0
    %1589 = vmatmul.mubr.f32.gmra.mxu0 %v1501
    %v1590 = vpop.f32.mrf.mxu0
    %v1591 = vadd.f32 %v1498, %v1590
    %v1592 = vpop.f32.mrf.mxu0
    %1593 = vmatprep.mubr.f32.mxu0 0.0
    %1594 = vmatmul.mubr.f32.gmra.mxu0 %v1504
    %v1595 = vpop.f32.mrf.mxu0
    %v1596 = vadd.f32 %v1498, %v1595
    %v1597 = vpop.f32.mrf.mxu0
    %1598 = vmatprep.mubr.f32.mxu0 0.0
    %1599 = vmatmul.mubr.f32.gmra.mxu0 %v1507
    %v1600 = vpop.f32.mrf.mxu0
    %v1601 = vadd.f32 %v1498, %v1600
    %v1602 = vpop.f32.mrf.mxu0
    %1603 = vmatprep.mubr.f32.mxu0 0.0
    %1604 = vmatmul.mubr.f32.gmra.mxu0 %v1510
    %v1605 = vpop.f32.mrf.mxu0
    %v1606 = vadd.f32 %v1498, %v1605
    %v1607 = vpop.f32.mrf.mxu0
    %1608 = vmatprep.mubr.f32.mxu0 0.0
    %1609 = vmatmul.mubr.f32.gmra.mxu0 %v1513
    %v1610 = vpop.f32.mrf.mxu0
    %v1611 = vadd.f32 %v1498, %v1610
    %v1612 = vpop.f32.mrf.mxu0
    %1613 = vmatprep.mubr.f32.mxu0 0.0
    %1614 = vmatmul.mubr.f32.gmra.mxu0 %v1516
    %v1615 = vpop.f32.mrf.mxu0
    %v1616 = vadd.f32 %v1498, %v1615
    %v1617 = vpop.f32.mrf.mxu0
    %1618 = vmatprep.mubr.f32.mxu0 0.0
    %1619 = vmatmul.mubr.f32.gmra.mxu0 %v1519
    %v1620 = vpop.f32.mrf.mxu0
    %v1621 = vadd.f32 %v1498, %v1620
    %v1622 = vpop.f32.mrf.mxu0
    %1623 = vmatprep.mubr.f32.mxu0 0.0
    %1624 = vmatmul.mubr.f32.gmra.mxu0 %v1522
    %v1625 = vpop.f32.mrf.mxu0
    %v1626 = vadd.f32 %v1498, %v1625
    %v1627 = vpop.f32.mrf.mxu0
    %1628 = vdwg.mxu0
    %v1629 = vld [vmem:[#allocation5] sm:$0xff]
    %v1630 = vld [vmem:[#allocation5 + $0x8] sm:$0xff]
    %v1631 = vld [vmem:[#allocation5 + $0x10] sm:$0xff]
    %v1632 = vld [vmem:[#allocation5 + $0x18] sm:$0xff]
    %v1633 = vld [vmem:[#allocation5 + $0x20] sm:$0xff]
    %v1634 = vld [vmem:[#allocation5 + $0x28] sm:$0xff]
    %v1635 = vld [vmem:[#allocation5 + $0x30] sm:$0xff]
    %v1636 = vld [vmem:[#allocation5 + $0x38] sm:$0xff]
    %v1637 = vadd.f32 %v1591, %v1629
    %v1638 = vadd.f32 %v1596, %v1630
    %v1639 = vadd.f32 %v1601, %v1631
    %v1640 = vadd.f32 %v1606, %v1632
    %v1641 = vadd.f32 %v1611, %v1633
    %v1642 = vadd.f32 %v1616, %v1634
    %v1643 = vadd.f32 %v1621, %v1635
    %v1644 = vadd.f32 %v1626, %v1636
    %v1645 = vlaneseq
    %v1646 = vand.u32 %v1645, 127
    %vm1647 = vcmp.lt.s32.totalorder %v1646, 16
    %v1648 = vsel %vm1647, 1, 0
    %v1649 = vcvt.s32.f32 %v1648
    %v1650 = vmul.f32 %v1637, %v1649
    %v1651 = vmul.f32 %v1638, %v1649
    %v1652 = vmul.f32 %v1639, %v1649
    %v1653 = vmul.f32 %v1640, %v1649
    %v1654 = vmul.f32 %v1641, %v1649
    %v1655 = vmul.f32 %v1642, %v1649
    %v1656 = vmul.f32 %v1643, %v1649
    %v1657 = vmul.f32 %v1644, %v1649
    %v1658 = vadd.f32 %v1650, %v1651
    %v1659 = vadd.f32 %v1658, %v1652
    %v1660 = vadd.f32 %v1659, %v1653
    %v1661 = vadd.f32 %v1660, %v1654
    %v1662 = vadd.f32 %v1661, %v1655
    %v1663 = vadd.f32 %v1662, %v1656
    %v1664 = vadd.f32 %v1663, %v1657
    %1665 = vadd.xlane.f32.xlu0 %v1664
    %v1666 = vpop.xlane.xlu0 %1665
    %v1667 = vrcp.pop 128.0
    %v1668 = vmul.f32 %v1666, %v1667
    %v1669 = vsub.f32 %v1637, %v1668
    %v1670 = vsub.f32 %v1638, %v1668
    %v1671 = vsub.f32 %v1639, %v1668
    %v1672 = vsub.f32 %v1640, %v1668
    %v1673 = vsub.f32 %v1641, %v1668
    %v1674 = vsub.f32 %v1642, %v1668
    %v1675 = vsub.f32 %v1643, %v1668
    %v1676 = vsub.f32 %v1644, %v1668
    %v1677 = vmul.f32 %v1669, %v1649
    %v1678 = vmul.f32 %v1670, %v1649
    %v1679 = vmul.f32 %v1671, %v1649
    %v1680 = vmul.f32 %v1672, %v1649
    %v1681 = vmul.f32 %v1673, %v1649
    %v1682 = vmul.f32 %v1674, %v1649
    %v1683 = vmul.f32 %v1675, %v1649
    %v1684 = vmul.f32 %v1676, %v1649
    %v1685 = vmul.f32 %v1677, %v1677
    %v1686 = vmul.f32 %v1678, %v1678
    %v1687 = vmul.f32 %v1679, %v1679
    %v1688 = vmul.f32 %v1680, %v1680
    %v1689 = vmul.f32 %v1681, %v1681
    %v1690 = vmul.f32 %v1682, %v1682
    %v1691 = vmul.f32 %v1683, %v1683
    %v1692 = vmul.f32 %v1684, %v1684
    %v1693 = vadd.f32 %v1685, %v1686
    %v1694 = vadd.f32 %v1693, %v1687
    %v1695 = vadd.f32 %v1694, %v1688
    %v1696 = vadd.f32 %v1695, %v1689
    %v1697 = vadd.f32 %v1696, %v1690
    %v1698 = vadd.f32 %v1697, %v1691
    %v1699 = vadd.f32 %v1698, %v1692
    %1700 = vadd.xlane.f32.xlu0 %v1699
    %v1701 = vpop.xlane.xlu0 %1700
    %v1702 = vmul.f32 %v1701, %v1667
    %v1703 = vadd.f32 %v1702, 1e-12
    %v1704 = vrsqrt.pop %v1703
    %v1705 = vmul.f32 %v1669, %v1704
    %v1706 = vmul.f32 %v1670, %v1704
    %v1707 = vmul.f32 %v1671, %v1704
    %v1708 = vmul.f32 %v1672, %v1704
    %v1709 = vmul.f32 %v1673, %v1704
    %v1710 = vmul.f32 %v1674, %v1704
    %v1711 = vmul.f32 %v1675, %v1704
    %v1712 = vmul.f32 %v1676, %v1704
    %v1713 = vld [vmem:[%s6] sm:$0x1]
    %v1715 = vlaneseq
    %v1716 = vshrl.u32 %v1715, 7
    %v1717 = vsub.s32 0, %v1716
    %v1718 = vrot.slane %v1713, %v1717
    %v1720 = vmul.f32 %v1705, %v1718
    %v1721 = vmul.f32 %v1706, %v1718
    %v1722 = vmul.f32 %v1707, %v1718
    %v1723 = vmul.f32 %v1708, %v1718
    %v1724 = vmul.f32 %v1709, %v1718
    %v1725 = vmul.f32 %v1710, %v1718
    %v1726 = vmul.f32 %v1711, %v1718
    %v1727 = vmul.f32 %v1712, %v1718
    %v1728 = vld [vmem:[%s7] sm:$0x1]
    %v1730 = vlaneseq
    %v1731 = vshrl.u32 %v1730, 7
    %v1732 = vsub.s32 0, %v1731
    %v1733 = vrot.slane %v1728, %v1732
    %v1735 = vadd.f32 %v1720, %v1733
    %v1736 = vadd.f32 %v1721, %v1733
    %v1737 = vadd.f32 %v1722, %v1733
    %v1738 = vadd.f32 %v1723, %v1733
    %v1739 = vadd.f32 %v1724, %v1733
    %v1740 = vadd.f32 %v1725, %v1733
    %v1741 = vadd.f32 %v1726, %v1733
    %v1742 = vadd.f32 %v1727, %v1733
    %1743 = vst [vmem:[#allocation13] sm:$0xff] %v1735
    %1744 = vst [vmem:[#allocation13 + $0x8] sm:$0xff] %v1736
    %1745 = vst [vmem:[#allocation13 + $0x10] sm:$0xff] %v1737
    %1746 = vst [vmem:[#allocation13 + $0x18] sm:$0xff] %v1738
    %1747 = vst [vmem:[#allocation13 + $0x20] sm:$0xff] %v1739
    %1748 = vst [vmem:[#allocation13 + $0x28] sm:$0xff] %v1740
    %1749 = vst [vmem:[#allocation13 + $0x30] sm:$0xff] %v1741
    %1750 = vst [vmem:[#allocation13 + $0x38] sm:$0xff] %v1742
    // Predicated region
    $region50: #{tpu_custom_call.1} parent=1 // pred_check
      _
    $region51: #{tpu_custom_call.1} parent=1 // pred_check_branch
      %1752 = sbr.rel (0) target = $region53
    $region52: #{tpu_custom_call.1} parent=1 // pred_region
      %s1754 = ssub.s32 1024, 1024
      %1755 = vsyncadd [#allocation7], %s1754
      %s1756 = sshll.u32 [#allocation13], 4
      %s1757 = int_to_ptr.vmem [resolvable:$true] %s1756
      %1762 = dma.vmem_to_hbm [thread:$0]  %s1757, 1024, %s8, [#allocation7], 128, 128, 8
    $region53: #{tpu_custom_call.1} parent=1 // pred_fallthru
      _
    // Predicated region
    $region54: #{tpu_custom_call.1} parent=1 // pred_check
      _
    $region55: #{tpu_custom_call.1} parent=1 // pred_check_branch
      %1764 = sbr.rel (0) target = $region57
    $region56: #{tpu_custom_call.1} parent=1 // pred_region
      %1765 = dma.done [#allocation7], 1024
    $region57: #{tpu_custom_call.1} parent=1 // pred_fallthru
      _
    %1766 = vsyncpa [#allocation6], 1
    %1767 = vsyncpa [#allocation9], 1
    %1768 = vsyncpa [#allocation12], 1
    %1769 = vsyncpa [#allocation7], 1

</llo_original>
